<compile_context>
chip_gen: v6e
topology: v6e:2x2x1
jax: 0.10.0
libtpu: 0.0.40
codegen_flags: <defaults>
</compile_context>

<pallas_src>
import math

import numpy as np
import jax
import jax.numpy as jnp
from jax.experimental import pallas as pl
from jax.experimental.pallas import tpu as pltpu


def _round_up(a, b):
    return -(-a // b) * b


def _irfft2_kernel(x_ref, ac_ref, acp_ref, acm_ref, wc_ref, wsn_ref, o_ref,
                   xs_ref):
    """grid = (batch-of-TN-slabs, output-lat tiles).

    x_ref   : (1, 2, Hc, TN*Mfp) bf16  [0]=real, [1]=imag spectrum; the TN
              slabs are laid side-by-side along lanes (one Mfp chunk per slab)
    ac_ref  : (TH, Hc) bf16   cos inverse-DFT matrix tile (lat axis)
    acp_ref : (TH, Hc) bf16   cos + sin   (Gauss 3-matmul trick)
    acm_ref : (TH, Hc) bf16   cos - sin
    wc_ref  : (Mfp, W) bf16   lon inverse-rDFT cos matrix (doubling + norm)
    wsn_ref : (Mfp, W) bf16   -sin matrix (sign baked in -> accumulating dot)
    o_ref   : (TN, TH, W) f32 real spatial output tile
    xs_ref  : (Hc, TN*Mfp) bf16 VMEM scratch holding xr + xi for this batch
    """
    TN, TH, W = o_ref.shape
    Mfp = wc_ref.shape[0]

    xr = x_ref[0, 0]                      # (Hc, TN*Mfp)
    xi = x_ref[0, 1]

    # xr + xi is shared by every output-lat tile of this batch step: compute
    # it once (first h tile) into VMEM scratch instead of per tile.
    @pl.when(pl.program_id(1) == 0)
    def _():
        xs_ref[...] = xr + xi

    # Stage 1: inverse DFT along lat via Gauss's 3-matmul complex multiply:
    #   zr = Ac@xr - As@xi = m0 - m1,    zi = As@xr + Ac@xi = m0 - m2
    m0 = jnp.dot(ac_ref[...], xs_ref[...], preferred_element_type=jnp.float32)
    m1 = jnp.dot(acp_ref[...], xi, preferred_element_type=jnp.float32)
    m2 = jnp.dot(acm_ref[...], xr, preferred_element_type=jnp.float32)
    zr = (m0 - m1).astype(jnp.bfloat16)   # (TH, TN*Mfp)
    zi = (m0 - m2).astype(jnp.bfloat16)

    # Stage 2: one-sided inverse real DFT along lon, one slab at a time.
    # Slices start at static multiples of Mfp (multiple of 128 lanes) so they
    # are tile-aligned views; the '+' lets the 2nd matmul accumulate in place.
    wc = wc_ref[...]
    wsn = wsn_ref[...]
    for s in range(TN):
        lo = s * Mfp
        o_ref[s] = (
            jnp.dot(zr[:, lo:lo + Mfp], wc, preferred_element_type=jnp.float32)
            + jnp.dot(zi[:, lo:lo + Mfp], wsn,
                      preferred_element_type=jnp.float32))


class InverseRealFFT2:
    """JAX/Pallas port of makani InverseRealFFT2 (no learnable parameters)."""

    def __init__(self, nlat, nlon, lmax=None, mmax=None):
        self.nlat = nlat
        self.nlon = nlon
        self.lmax = min(lmax or nlat, nlat)
        self.mmax = min(mmax or nlon // 2 + 1, nlon // 2 + 1)
        self.truncate = not (self.lmax == nlat and self.mmax == nlon // 2 + 1)
        self.lmax_high = math.ceil(self.lmax / 2)
        self.lmax_low = math.floor(self.lmax / 2)

        H, W = nlat, nlon
        Mf = W // 2 + 1
        self.Mf = Mf
        # Lane-pad the lon-frequency (stage-2 contraction) axis to 128.
        self.Mfp = max(128, _round_up(Mf, 128))
        # Sublane-pad the lat axis (stage-1 contraction rows) to 16 (bf16).
        self.Hc = _round_up(H, 16)
        # Output-lat tiling: bounds live stage-1 intermediates (matters for
        # v7x's 64 MiB VMEM at makani scale); a single tile for small H.
        if self.Hc <= 512:
            self.TH = self.Hc
            self.Ho = self.Hc
        else:
            self.TH = 256
            self.Ho = _round_up(H, self.TH)
        self.n_h_tiles = self.Ho // self.TH

        # Physical VMEM of this generation (fallback: 128 MiB = v5e/v6e).
        try:
            self._vmem_cap = int(pltpu.get_tpu_info().vmem_capacity_bytes)
        except Exception:
            self._vmem_cap = 128 << 20

        # --- lat-axis inverse DFT matrices (Gauss 3-matmul form), bf16,
        #     zero-padded to (Ho, Hc). ---
        hh = np.arange(H)
        ang_h = 2.0 * np.pi * np.outer(hh, hh) / H        # [out_lat, l]
        ac = np.zeros((self.Ho, self.Hc))
        as_ = np.zeros((self.Ho, self.Hc))
        ac[:H, :H] = np.cos(ang_h)
        as_[:H, :H] = np.sin(ang_h)
        self._ac = jnp.asarray(ac, dtype=jnp.bfloat16)           # (Ho, Hc)
        self._acp = jnp.asarray(ac + as_, dtype=jnp.bfloat16)
        self._acm = jnp.asarray(ac - as_, dtype=jnp.bfloat16)

        # --- lon-axis one-sided inverse rDFT matrices: Hermitian doubling
        #     (DC / Nyquist counted once), the stage-2 minus sign and the norm
        #     scale baked in; zero-padded to Mfp rows; cached per norm so
        #     nothing is rebuilt per call. ---
        m = np.arange(Mf)
        w = np.arange(W)
        ang_w = 2.0 * np.pi * np.outer(m, w) / W          # [m, out_lon]
        cmult = np.full((Mf, 1), 2.0)
        cmult[0, 0] = 1.0                                 # DC counted once
        if W % 2 == 0:
            cmult[W // 2, 0] = 1.0                        # Nyquist counted once
        wc = np.zeros((self.Mfp, W))
        wsn = np.zeros((self.Mfp, W))
        wc[:Mf] = cmult * np.cos(ang_w)
        wsn[:Mf] = -cmult * np.sin(ang_w)                 # minus sign baked in
        self._wc_np = wc
        self._wsn_np = wsn
        self._lon_cache = {}
        self._lon_mats("ortho")                           # build default norm

        # pl.Buffered(1) single-buffers grid-invariant weights (~7.5 MiB VMEM
        # saved at makani scale, matters on v7x); flipped off at runtime if
        # this jax build rejects the pipeline_mode kwarg / buffer_count=1.
        self._single_buffer_weights = True

    # ----------------------------------------------------------------- utils
    def _norm_scale(self, norm):
        HW = self.nlat * self.nlon
        if norm == "ortho":
            return 1.0 / math.sqrt(HW)
        if norm == "backward" or norm is None:
            return 1.0 / HW
        if norm == "forward":
            return 1.0
        raise ValueError(f"unknown norm {norm!r}")

    def _lon_mats(self, norm):
        if norm not in self._lon_cache:
            s = self._norm_scale(norm)
            self._lon_cache[norm] = (
                jnp.asarray(self._wc_np * s, dtype=jnp.bfloat16),
                jnp.asarray(self._wsn_np * s, dtype=jnp.bfloat16),
            )
        return self._lon_cache[norm]

    def _pick_tn(self, N):
        """Slabs per grid step: widen the stage-1 matmul towards ~512 lanes
        while keeping >= ~4 batch grid steps (pipelining / megacore) and a
        generation-aware VMEM streaming budget."""
        tn = max(1, min(N, 512 // self.Mfp))
        tn = min(tn, max(1, N // 4))
        budget = self._vmem_cap // 4

        def stream_bytes(t):
            x_blk = 2 * (2 * self.Hc * t * self.Mfp * 2)   # double-buffered in
            o_blk = 2 * (t * self.TH * self.nlon * 4)      # double-buffered out
            xs = self.Hc * t * self.Mfp * 2                # scratch
            return x_blk + o_blk + xs

        while tn > 1 and stream_bytes(tn) > budget:
            tn -= 1
        return max(1, tn)

    def _vmem_limit(self, TN, single_buffer):
        lanes = TN * self.Mfp
        lat_bufs = 1 if (self.n_h_tiles == 1 and single_buffer) else 2
        lon_bufs = 1 if single_buffer else 2
        weights = (3 * self.TH * self.Hc * 2 * lat_bufs
                   + 2 * self.Mfp * self.nlon * 2 * lon_bufs)
        stream = (2 * (2 * self.Hc * lanes * 2)
                  + 2 * (TN * self.TH * self.nlon * 4))
        scratch = self.Hc * lanes * 2
        interm = (self.TH * lanes * (3 * 4 + 2 * 2)        # m0/m1/m2 + zr/zi
                  + TN * self.TH * self.nlon * 4)          # stage-2 result
        est = weights + stream + scratch + interm
        cap = self._vmem_cap * 3 // 4
        return int(min(cap, max(32 << 20, int(est * 1.5))))

    # ----------------------------------------------------------- pallas call
    def _run(self, x_packed, wc, wsn, NB, TN, single_buffer):
        Hc, Ho, TH, W, Mfp = self.Hc, self.Ho, self.TH, self.nlon, self.Mfp
        lanes = TN * Mfp
        lat_invariant = self.n_h_tiles == 1

        def w_spec(shape, index_map, invariant):
            if single_buffer and invariant:
                return pl.BlockSpec(shape, index_map,
                                    pipeline_mode=pl.Buffered(1))
            return pl.BlockSpec(shape, index_map)

        in_specs = [
            pl.BlockSpec((1, 2, Hc, lanes), lambda n, h: (n, 0, 0, 0)),
            w_spec((TH, Hc), lambda n, h: (h, 0), lat_invariant),
            w_spec((TH, Hc), lambda n, h: (h, 0), lat_invariant),
            w_spec((TH, Hc), lambda n, h: (h, 0), lat_invariant),
            w_spec((Mfp, W), lambda n, h: (0, 0), True),
            w_spec((Mfp, W), lambda n, h: (0, 0), True),
        ]
        out_spec = pl.BlockSpec((TN, TH, W), lambda n, h: (n, h, 0))

        return pl.pallas_call(
            _irfft2_kernel,
            out_shape=jax.ShapeDtypeStruct((NB * TN, Ho, W), jnp.float32),
            grid_spec=pltpu.PrefetchScalarGridSpec(
                num_scalar_prefetch=0,
                grid=(NB, self.n_h_tiles),
                in_specs=in_specs,
                out_specs=out_spec,
                scratch_shapes=[pltpu.VMEM((Hc, lanes), jnp.bfloat16)],
            ),
            compiler_params=pltpu.CompilerParams(
                dimension_semantics=("parallel", "arbitrary"),
                vmem_limit_bytes=self._vmem_limit(TN, single_buffer),
            ),
        )(x_packed, self._ac, self._acp, self._acm, wc, wsn)

    # --------------------------------------------------------------- forward
    def __call__(self, x, norm="ortho"):
        H, W, Mf, Mfp = self.nlat, self.nlon, self.Mf, self.Mfp
        Hc = self.Hc

        # ---- glue: mmax truncation + lat split / zero-pad, as in torch ----
        xt = x[..., : self.mmax]
        if self.truncate:
            xth = xt[..., : self.lmax_high, :]
            xtl = xt[..., -self.lmax_low:, :]
            zpad = jnp.zeros(
                xth.shape[:-2] + (self.nlat - self.lmax, xt.shape[-1]),
                xt.dtype)
            xt = jnp.concatenate([xth, zpad, xtl], axis=-2)

        # irfft2(s=(nlat, nlon)) semantics: crop/pad lat to nlat, lon-freq <= Mf.
        L = xt.shape[-2]
        if L < H:
            xt = jnp.pad(xt, [(0, 0)] * (xt.ndim - 2) + [(0, H - L), (0, 0)])
        elif L > H:
            xt = xt[..., :H, :]
        Mc = min(xt.shape[-1], Mf)
        xt = xt[..., :Mc]

        batch_shape = xt.shape[:-2]
        N = int(np.prod(batch_shape)) if batch_shape else 1

        TN = self._pick_tn(N)
        Np = _round_up(N, TN)
        NB = Np // TN
        lanes = TN * Mfp

        # real/imag split (bf16), pad freq -> Mfp, lat -> Hc, batch -> Np,
        # then lay the TN slabs side-by-side along lanes and stack real/imag,
        # so the kernel's BlockSpec delivers a ready (Hc, TN*Mfp) slab (no
        # in-kernel concatenate).  Pure layout plumbing in XLA.
        def to_slab(a):
            a = a.astype(jnp.bfloat16).reshape(N, -1, Mc)
            a = jnp.pad(a, [(0, Np - N), (0, Hc - a.shape[1]), (0, Mfp - Mc)])
            a = a.reshape(NB, TN, Hc, Mfp).transpose(0, 2, 1, 3)
            return a.reshape(NB, Hc, lanes)

        x_packed = jnp.stack(
            [to_slab(jnp.real(xt)), to_slab(jnp.imag(xt))],
            axis=1)                                   # (NB, 2, Hc, TN*Mfp)

        wc, wsn = self._lon_mats(norm)

        try:
            out = self._run(x_packed, wc, wsn, NB, TN,
                            self._single_buffer_weights)
        except Exception:
            if not self._single_buffer_weights:
                raise
            # pl.Buffered(1) not supported by this jax build: retry with the
            # default double-buffered weight BlockSpecs.
            self._single_buffer_weights = False
            out = self._run(x_packed, wc, wsn, NB, TN, False)

        out = out[:N, :H, :]
        return out.reshape(batch_shape + (H, W))


def _reference_forward(x, nlat, nlon, lmax, mmax, norm="ortho"):
    """Pure-JAX replica of the torch forward (uses jnp.fft.irfft2)."""
    lmax = min(lmax or nlat, nlat)
    mmax = min(mmax or nlon // 2 + 1, nlon // 2 + 1)
    truncate = not (lmax == nlat and mmax == nlon // 2 + 1)
    xt = x[..., :mmax]
    if truncate:
        lh, ll = math.ceil(lmax / 2), math.floor(lmax / 2)
        xth = xt[..., :lh, :]
        xtl = xt[..., -ll:, :]
        zp = jnp.zeros(xth.shape[:-2] + (nlat - lmax, xt.shape[-1]), xt.dtype)
        xt = jnp.concatenate([xth, zp, xtl], axis=-2)
    return jnp.fft.irfft2(xt, s=(nlat, nlon), axes=(-2, -1), norm=norm)


if __name__ == "__main__":
    # Small config: nlat=16, nlon=16, lmax=12, mmax=8 (truncated in both axes)
    B, C = 2, 4
    nlat, nlon, lmax, mmax = 16, 16, 12, 8

    key = jax.random.PRNGKey(0)
    kr, ki = jax.random.split(key)
    # Complex spectral input, shape (B, C, lmax, mmax) -- NCHW-like layout.
    xr = jax.random.normal(kr, (B, C, lmax, mmax), dtype=jnp.float32)
    xi = jax.random.normal(ki, (B, C, lmax, mmax), dtype=jnp.float32)
    x = (xr + 1j * xi).astype(jnp.complex64)

    ifft = InverseRealFFT2(nlat, nlon, lmax=lmax, mmax=mmax)
    out = jax.block_until_ready(ifft(x, norm="ortho"))

    assert out.shape == (B, C, nlat, nlon), out.shape
    assert out.dtype == jnp.float32, out.dtype

    ref = jax.block_until_ready(
        _reference_forward(x, nlat, nlon, lmax, mmax, norm="ortho"))

    out_np = np.asarray(out)
    ref_np = np.asarray(ref)
    err = np.abs(out_np - ref_np)
    max_err = float(err.max())
    rel_l2 = float(np.linalg.norm(err) / max(np.linalg.norm(ref_np), 1e-12))
    # bf16 operands with f32 accumulation: expect ~1e-2 abs / <1e-2 rel-L2 err.
    if not (np.allclose(out_np, ref_np, atol=5e-2, rtol=5e-2)
            and rel_l2 < 2e-2):
        raise AssertionError(
            f"Pallas irfft2 mismatch: max abs err={max_err}, rel_l2={rel_l2}")

    print("KERNEL_OK")
</pallas_src>

<mosaic_0001>
module attributes {stable_mosaic.version = 11 : i64} {
  func.func @_irfft2_kernel(%arg0: i32, %arg1: i32, %arg2: memref<1x2x16x256xbf16, #tpu.memory_space<vmem>>, %arg3: memref<16x16xbf16, #tpu.memory_space<vmem>>, %arg4: memref<16x16xbf16, #tpu.memory_space<vmem>>, %arg5: memref<16x16xbf16, #tpu.memory_space<vmem>>, %arg6: memref<128x16xbf16, #tpu.memory_space<vmem>>, %arg7: memref<128x16xbf16, #tpu.memory_space<vmem>>, %arg8: memref<2x16x16xf32, #tpu.memory_space<vmem>>, %arg9: memref<16x256xbf16, #tpu.memory_space<vmem>>) attributes {dimension_semantics = [#tpu.dimension_semantics<parallel>, #tpu.dimension_semantics<arbitrary>], iteration_bounds = array<i64: 4, 1>, scalar_prefetch = 0 : i64, scratch_operands = 1 : i64, tpu.core_type = #tpu.core_type<tc>, window_params = [{transform_indices = @transform_0, window_bounds = array<i64: 1, 2, 16, 256>}, {pipeline_mode = #tpu.pipeline_mode<synchronous>, transform_indices = @transform_1, window_bounds = array<i64: 16, 16>}, {pipeline_mode = #tpu.pipeline_mode<synchronous>, transform_indices = @transform_2, window_bounds = array<i64: 16, 16>}, {pipeline_mode = #tpu.pipeline_mode<synchronous>, transform_indices = @transform_3, window_bounds = array<i64: 16, 16>}, {pipeline_mode = #tpu.pipeline_mode<synchronous>, transform_indices = @transform_4, window_bounds = array<i64: 128, 16>}, {pipeline_mode = #tpu.pipeline_mode<synchronous>, transform_indices = @transform_5, window_bounds = array<i64: 128, 16>}, {transform_indices = @transform_6, window_bounds = array<i64: 2, 16, 16>}]} {
    %c0 = arith.constant 0 : index
    %c0_0 = arith.constant 0 : index
    %c0_1 = arith.constant 0 : index
    %c0_2 = arith.constant 0 : index
    %0 = vector.load %arg2[%c0, %c0_0, %c0_1, %c0_2] : memref<1x2x16x256xbf16, #tpu.memory_space<vmem>>, vector<1x1x16x256xbf16>
    %1 = vector.shape_cast %0 : vector<1x1x16x256xbf16> to vector<16x256xbf16>
    %c0_3 = arith.constant 0 : index
    %c1 = arith.constant 1 : index
    %c0_4 = arith.constant 0 : index
    %c0_5 = arith.constant 0 : index
    %2 = vector.load %arg2[%c0_3, %c1, %c0_4, %c0_5] : memref<1x2x16x256xbf16, #tpu.memory_space<vmem>>, vector<1x1x16x256xbf16>
    %3 = vector.shape_cast %2 : vector<1x1x16x256xbf16> to vector<16x256xbf16>
    %c0_i32 = arith.constant 0 : i32
    %4 = arith.cmpi eq, %arg1, %c0_i32 : i32
    %5 = arith.extui %4 : i1 to i32
    %c0_i32_6 = arith.constant 0 : i32
    %6 = arith.cmpi ne, %5, %c0_i32_6 : i32
    scf.if %6 {
      %36 = arith.addf %1, %3 : vector<16x256xbf16>
      %c0_31 = arith.constant 0 : index
      %c0_32 = arith.constant 0 : index
      %37 = vector.load %arg9[%c0_31, %c0_32] : memref<16x256xbf16, #tpu.memory_space<vmem>>, vector<16x256xbf16>
      tpu.vector_store %arg9[%c0_31, %c0_32], %36 {strides = array<i32>} : memref<16x256xbf16, #tpu.memory_space<vmem>>, vector<16x256xbf16>,
    } else {
    }
    %c0_7 = arith.constant 0 : index
    %c0_8 = arith.constant 0 : index
    %7 = vector.load %arg3[%c0_7, %c0_8] : memref<16x16xbf16, #tpu.memory_space<vmem>>, vector<16x16xbf16>
    %c0_9 = arith.constant 0 : index
    %c0_10 = arith.constant 0 : index
    %8 = vector.load %arg9[%c0_9, %c0_10] : memref<16x256xbf16, #tpu.memory_space<vmem>>, vector<16x256xbf16>
    %cst = arith.constant dense<0.000000e+00> : vector<16x256xf32>
    %9 = tpu.matmul %7, %8, %cst {dimension_numbers = #tpu.dot_dimension_numbers<[1], [0], [0], [1], [0, 0, 1, 1], [], []>} : vector<16x16xbf16>, vector<16x256xbf16>, vector<16x256xf32> -> vector<16x256xf32>
    %c0_11 = arith.constant 0 : index
    %c0_12 = arith.constant 0 : index
    %10 = vector.load %arg4[%c0_11, %c0_12] : memref<16x16xbf16, #tpu.memory_space<vmem>>, vector<16x16xbf16>
    %cst_13 = arith.constant dense<0.000000e+00> : vector<16x256xf32>
    %11 = tpu.matmul %10, %3, %cst_13 {dimension_numbers = #tpu.dot_dimension_numbers<[1], [0], [0], [1], [0, 0, 1, 1], [], []>} : vector<16x16xbf16>, vector<16x256xbf16>, vector<16x256xf32> -> vector<16x256xf32>
    %c0_14 = arith.constant 0 : index
    %c0_15 = arith.constant 0 : index
    %12 = vector.load %arg5[%c0_14, %c0_15] : memref<16x16xbf16, #tpu.memory_space<vmem>>, vector<16x16xbf16>
    %cst_16 = arith.constant dense<0.000000e+00> : vector<16x256xf32>
    %13 = tpu.matmul %12, %1, %cst_16 {dimension_numbers = #tpu.dot_dimension_numbers<[1], [0], [0], [1], [0, 0, 1, 1], [], []>} : vector<16x16xbf16>, vector<16x256xbf16>, vector<16x256xf32> -> vector<16x256xf32>
    %14 = arith.subf %9, %11 : vector<16x256xf32>
    %15 = arith.truncf %14 : vector<16x256xf32> to vector<16x256xbf16>
    %16 = arith.subf %9, %13 : vector<16x256xf32>
    %17 = arith.truncf %16 : vector<16x256xf32> to vector<16x256xbf16>
    %c0_17 = arith.constant 0 : index
    %c0_18 = arith.constant 0 : index
    %18 = vector.load %arg6[%c0_17, %c0_18] : memref<128x16xbf16, #tpu.memory_space<vmem>>, vector<128x16xbf16>
    %c0_19 = arith.constant 0 : index
    %c0_20 = arith.constant 0 : index
    %19 = vector.load %arg7[%c0_19, %c0_20] : memref<128x16xbf16, #tpu.memory_space<vmem>>, vector<128x16xbf16>
    %20 = vector.extract_strided_slice %15 {offsets = [0, 0], sizes = [16, 128], strides = [1, 1]} : vector<16x256xbf16> to vector<16x128xbf16>
    %cst_21 = arith.constant dense<0.000000e+00> : vector<16x16xf32>
    %21 = tpu.matmul %20, %18, %cst_21 {dimension_numbers = #tpu.dot_dimension_numbers<[1], [0], [0], [1], [0, 0, 1, 1], [], []>} : vector<16x128xbf16>, vector<128x16xbf16>, vector<16x16xf32> -> vector<16x16xf32>
    %22 = vector.extract_strided_slice %17 {offsets = [0, 0], sizes = [16, 128], strides = [1, 1]} : vector<16x256xbf16> to vector<16x128xbf16>
    %cst_22 = arith.constant dense<0.000000e+00> : vector<16x16xf32>
    %23 = tpu.matmul %22, %19, %cst_22 {dimension_numbers = #tpu.dot_dimension_numbers<[1], [0], [0], [1], [0, 0, 1, 1], [], []>} : vector<16x128xbf16>, vector<128x16xbf16>, vector<16x16xf32> -> vector<16x16xf32>
    %24 = arith.addf %21, %23 : vector<16x16xf32>
    %c0_23 = arith.constant 0 : index
    %c0_24 = arith.constant 0 : index
    %c0_25 = arith.constant 0 : index
    %25 = vector.load %arg8[%c0_23, %c0_24, %c0_25] : memref<2x16x16xf32, #tpu.memory_space<vmem>>, vector<1x16x16xf32>
    %26 = vector.shape_cast %25 : vector<1x16x16xf32> to vector<16x16xf32>
    %27 = vector.shape_cast %24 : vector<16x16xf32> to vector<1x16x16xf32>
    tpu.vector_store %arg8[%c0_23, %c0_24, %c0_25], %27 {strides = array<i32>} : memref<2x16x16xf32, #tpu.memory_space<vmem>>, vector<1x16x16xf32>,
    %28 = vector.extract_strided_slice %15 {offsets = [0, 128], sizes = [16, 128], strides = [1, 1]} : vector<16x256xbf16> to vector<16x128xbf16>
    %cst_26 = arith.constant dense<0.000000e+00> : vector<16x16xf32>
    %29 = tpu.matmul %28, %18, %cst_26 {dimension_numbers = #tpu.dot_dimension_numbers<[1], [0], [0], [1], [0, 0, 1, 1], [], []>} : vector<16x128xbf16>, vector<128x16xbf16>, vector<16x16xf32> -> vector<16x16xf32>
    %30 = vector.extract_strided_slice %17 {offsets = [0, 128], sizes = [16, 128], strides = [1, 1]} : vector<16x256xbf16> to vector<16x128xbf16>
    %cst_27 = arith.constant dense<0.000000e+00> : vector<16x16xf32>
    %31 = tpu.matmul %30, %19, %cst_27 {dimension_numbers = #tpu.dot_dimension_numbers<[1], [0], [0], [1], [0, 0, 1, 1], [], []>} : vector<16x128xbf16>, vector<128x16xbf16>, vector<16x16xf32> -> vector<16x16xf32>
    %32 = arith.addf %29, %31 : vector<16x16xf32>
    %c1_28 = arith.constant 1 : index
    %c0_29 = arith.constant 0 : index
    %c0_30 = arith.constant 0 : index
    %33 = vector.load %arg8[%c1_28, %c0_29, %c0_30] : memref<2x16x16xf32, #tpu.memory_space<vmem>>, vector<1x16x16xf32>
    %34 = vector.shape_cast %33 : vector<1x16x16xf32> to vector<16x16xf32>
    %35 = vector.shape_cast %32 : vector<16x16xf32> to vector<1x16x16xf32>
    tpu.vector_store %arg8[%c1_28, %c0_29, %c0_30], %35 {strides = array<i32>} : memref<2x16x16xf32, #tpu.memory_space<vmem>>, vector<1x16x16xf32>,
    return
  }
  func.func @transform_0(%arg0: i32, %arg1: i32) -> (i32, i32, i32, i32) {
    %c0_i32 = arith.constant 0 : i32
    %c0_i32_0 = arith.constant 0 : i32
    %c0_i32_1 = arith.constant 0 : i32
    %c0_i32_2 = arith.constant 0 : i32
    return %arg0, %c0_i32, %c0_i32_0, %c0_i32_1 : i32, i32, i32, i32
  }
  func.func @transform_1(%arg0: i32, %arg1: i32) -> (i32, i32) {
    %c0_i32 = arith.constant 0 : i32
    %c0_i32_0 = arith.constant 0 : i32
    return %arg1, %c0_i32 : i32, i32
  }
  func.func @transform_2(%arg0: i32, %arg1: i32) -> (i32, i32) {
    %c0_i32 = arith.constant 0 : i32
    %c0_i32_0 = arith.constant 0 : i32
    return %arg1, %c0_i32 : i32, i32
  }
  func.func @transform_3(%arg0: i32, %arg1: i32) -> (i32, i32) {
    %c0_i32 = arith.constant 0 : i32
    %c0_i32_0 = arith.constant 0 : i32
    return %arg1, %c0_i32 : i32, i32
  }
  func.func @transform_4(%arg0: i32, %arg1: i32) -> (i32, i32) {
    %c0_i32 = arith.constant 0 : i32
    %c0_i32_0 = arith.constant 0 : i32
    %c0_i32_1 = arith.constant 0 : i32
    return %c0_i32, %c0_i32_0 : i32, i32
  }
  func.func @transform_5(%arg0: i32, %arg1: i32) -> (i32, i32) {
    %c0_i32 = arith.constant 0 : i32
    %c0_i32_0 = arith.constant 0 : i32
    %c0_i32_1 = arith.constant 0 : i32
    return %c0_i32, %c0_i32_0 : i32, i32
  }
  func.func @transform_6(%arg0: i32, %arg1: i32) -> (i32, i32, i32) {
    %c0_i32 = arith.constant 0 : i32
    %c0_i32_0 = arith.constant 0 : i32
    return %arg0, %arg1, %c0_i32 : i32, i32, i32
  }
}

module attributes {stable_mosaic.version = 11 : i64} {
  func.func @_irfft2_kernel(%arg0: i32, %arg1: i32, %arg2: memref<1x2x16x256xbf16, #tpu.memory_space<vmem>>, %arg3: memref<16x16xbf16, #tpu.memory_space<vmem>>, %arg4: memref<16x16xbf16, #tpu.memory_space<vmem>>, %arg5: memref<16x16xbf16, #tpu.memory_space<vmem>>, %arg6: memref<128x16xbf16, #tpu.memory_space<vmem>>, %arg7: memref<128x16xbf16, #tpu.memory_space<vmem>>, %arg8: memref<2x16x16xf32, #tpu.memory_space<vmem>>, %arg9: memref<16x256xbf16, #tpu.memory_space<vmem>>) attributes {dimension_semantics = [#tpu.dimension_semantics<parallel>, #tpu.dimension_semantics<arbitrary>], iteration_bounds = array<i64: 4, 1>, scalar_prefetch = 0 : i64, scratch_operands = 1 : i64, tpu.core_type = #tpu.core_type<tc>, window_params = [{transform_indices = @transform_0, window_bounds = array<i64: 1, 2, 16, 256>}, {transform_indices = @transform_1, window_bounds = array<i64: 16, 16>}, {transform_indices = @transform_2, window_bounds = array<i64: 16, 16>}, {transform_indices = @transform_3, window_bounds = array<i64: 16, 16>}, {pipeline_mode = #tpu.pipeline_mode<synchronous>, transform_indices = @transform_4, window_bounds = array<i64: 128, 16>}, {pipeline_mode = #tpu.pipeline_mode<synchronous>, transform_indices = @transform_5, window_bounds = array<i64: 128, 16>}, {transform_indices = @transform_6, window_bounds = array<i64: 2, 16, 16>}]} {
    %c0 = arith.constant 0 : index
    %c0_0 = arith.constant 0 : index
    %c0_1 = arith.constant 0 : index
    %c0_2 = arith.constant 0 : index
    %0 = vector.load %arg2[%c0, %c0_0, %c0_1, %c0_2] : memref<1x2x16x256xbf16, #tpu.memory_space<vmem>>, vector<1x1x16x256xbf16>
    %1 = vector.shape_cast %0 : vector<1x1x16x256xbf16> to vector<16x256xbf16>
    %c0_3 = arith.constant 0 : index
    %c1 = arith.constant 1 : index
    %c0_4 = arith.constant 0 : index
    %c0_5 = arith.constant 0 : index
    %2 = vector.load %arg2[%c0_3, %c1, %c0_4, %c0_5] : memref<1x2x16x256xbf16, #tpu.memory_space<vmem>>, vector<1x1x16x256xbf16>
    %3 = vector.shape_cast %2 : vector<1x1x16x256xbf16> to vector<16x256xbf16>
    %c0_i32 = arith.constant 0 : i32
    %4 = arith.cmpi eq, %arg1, %c0_i32 : i32
    %5 = arith.extui %4 : i1 to i32
    %c0_i32_6 = arith.constant 0 : i32
    %6 = arith.cmpi ne, %5, %c0_i32_6 : i32
    scf.if %6 {
      %36 = arith.addf %1, %3 : vector<16x256xbf16>
      %c0_31 = arith.constant 0 : index
      %c0_32 = arith.constant 0 : index
      %37 = vector.load %arg9[%c0_31, %c0_32] : memref<16x256xbf16, #tpu.memory_space<vmem>>, vector<16x256xbf16>
      tpu.vector_store %arg9[%c0_31, %c0_32], %36 {strides = array<i32>} : memref<16x256xbf16, #tpu.memory_space<vmem>>, vector<16x256xbf16>,
    } else {
    }
    %c0_7 = arith.constant 0 : index
    %c0_8 = arith.constant 0 : index
    %7 = vector.load %arg3[%c0_7, %c0_8] : memref<16x16xbf16, #tpu.memory_space<vmem>>, vector<16x16xbf16>
    %c0_9 = arith.constant 0 : index
    %c0_10 = arith.constant 0 : index
    %8 = vector.load %arg9[%c0_9, %c0_10] : memref<16x256xbf16, #tpu.memory_space<vmem>>, vector<16x256xbf16>
    %cst = arith.constant dense<0.000000e+00> : vector<16x256xf32>
    %9 = tpu.matmul %7, %8, %cst {dimension_numbers = #tpu.dot_dimension_numbers<[1], [0], [0], [1], [0, 0, 1, 1], [], []>} : vector<16x16xbf16>, vector<16x256xbf16>, vector<16x256xf32> -> vector<16x256xf32>
    %c0_11 = arith.constant 0 : index
    %c0_12 = arith.constant 0 : index
    %10 = vector.load %arg4[%c0_11, %c0_12] : memref<16x16xbf16, #tpu.memory_space<vmem>>, vector<16x16xbf16>
    %cst_13 = arith.constant dense<0.000000e+00> : vector<16x256xf32>
    %11 = tpu.matmul %10, %3, %cst_13 {dimension_numbers = #tpu.dot_dimension_numbers<[1], [0], [0], [1], [0, 0, 1, 1], [], []>} : vector<16x16xbf16>, vector<16x256xbf16>, vector<16x256xf32> -> vector<16x256xf32>
    %c0_14 = arith.constant 0 : index
    %c0_15 = arith.constant 0 : index
    %12 = vector.load %arg5[%c0_14, %c0_15] : memref<16x16xbf16, #tpu.memory_space<vmem>>, vector<16x16xbf16>
    %cst_16 = arith.constant dense<0.000000e+00> : vector<16x256xf32>
    %13 = tpu.matmul %12, %1, %cst_16 {dimension_numbers = #tpu.dot_dimension_numbers<[1], [0], [0], [1], [0, 0, 1, 1], [], []>} : vector<16x16xbf16>, vector<16x256xbf16>, vector<16x256xf32> -> vector<16x256xf32>
    %14 = arith.subf %9, %11 : vector<16x256xf32>
    %15 = arith.truncf %14 : vector<16x256xf32> to vector<16x256xbf16>
    %16 = arith.subf %9, %13 : vector<16x256xf32>
    %17 = arith.truncf %16 : vector<16x256xf32> to vector<16x256xbf16>
    %c0_17 = arith.constant 0 : index
    %c0_18 = arith.constant 0 : index
    %18 = vector.load %arg6[%c0_17, %c0_18] : memref<128x16xbf16, #tpu.memory_space<vmem>>, vector<128x16xbf16>
    %c0_19 = arith.constant 0 : index
    %c0_20 = arith.constant 0 : index
    %19 = vector.load %arg7[%c0_19, %c0_20] : memref<128x16xbf16, #tpu.memory_space<vmem>>, vector<128x16xbf16>
    %20 = vector.extract_strided_slice %15 {offsets = [0, 0], sizes = [16, 128], strides = [1, 1]} : vector<16x256xbf16> to vector<16x128xbf16>
    %cst_21 = arith.constant dense<0.000000e+00> : vector<16x16xf32>
    %21 = tpu.matmul %20, %18, %cst_21 {dimension_numbers = #tpu.dot_dimension_numbers<[1], [0], [0], [1], [0, 0, 1, 1], [], []>} : vector<16x128xbf16>, vector<128x16xbf16>, vector<16x16xf32> -> vector<16x16xf32>
    %22 = vector.extract_strided_slice %17 {offsets = [0, 0], sizes = [16, 128], strides = [1, 1]} : vector<16x256xbf16> to vector<16x128xbf16>
    %cst_22 = arith.constant dense<0.000000e+00> : vector<16x16xf32>
    %23 = tpu.matmul %22, %19, %cst_22 {dimension_numbers = #tpu.dot_dimension_numbers<[1], [0], [0], [1], [0, 0, 1, 1], [], []>} : vector<16x128xbf16>, vector<128x16xbf16>, vector<16x16xf32> -> vector<16x16xf32>
    %24 = arith.addf %21, %23 : vector<16x16xf32>
    %c0_23 = arith.constant 0 : index
    %c0_24 = arith.constant 0 : index
    %c0_25 = arith.constant 0 : index
    %25 = vector.load %arg8[%c0_23, %c0_24, %c0_25] : memref<2x16x16xf32, #tpu.memory_space<vmem>>, vector<1x16x16xf32>
    %26 = vector.shape_cast %25 : vector<1x16x16xf32> to vector<16x16xf32>
    %27 = vector.shape_cast %24 : vector<16x16xf32> to vector<1x16x16xf32>
    tpu.vector_store %arg8[%c0_23, %c0_24, %c0_25], %27 {strides = array<i32>} : memref<2x16x16xf32, #tpu.memory_space<vmem>>, vector<1x16x16xf32>,
    %28 = vector.extract_strided_slice %15 {offsets = [0, 128], sizes = [16, 128], strides = [1, 1]} : vector<16x256xbf16> to vector<16x128xbf16>
    %cst_26 = arith.constant dense<0.000000e+00> : vector<16x16xf32>
    %29 = tpu.matmul %28, %18, %cst_26 {dimension_numbers = #tpu.dot_dimension_numbers<[1], [0], [0], [1], [0, 0, 1, 1], [], []>} : vector<16x128xbf16>, vector<128x16xbf16>, vector<16x16xf32> -> vector<16x16xf32>
    %30 = vector.extract_strided_slice %17 {offsets = [0, 128], sizes = [16, 128], strides = [1, 1]} : vector<16x256xbf16> to vector<16x128xbf16>
    %cst_27 = arith.constant dense<0.000000e+00> : vector<16x16xf32>
    %31 = tpu.matmul %30, %19, %cst_27 {dimension_numbers = #tpu.dot_dimension_numbers<[1], [0], [0], [1], [0, 0, 1, 1], [], []>} : vector<16x128xbf16>, vector<128x16xbf16>, vector<16x16xf32> -> vector<16x16xf32>
    %32 = arith.addf %29, %31 : vector<16x16xf32>
    %c1_28 = arith.constant 1 : index
    %c0_29 = arith.constant 0 : index
    %c0_30 = arith.constant 0 : index
    %33 = vector.load %arg8[%c1_28, %c0_29, %c0_30] : memref<2x16x16xf32, #tpu.memory_space<vmem>>, vector<1x16x16xf32>
    %34 = vector.shape_cast %33 : vector<1x16x16xf32> to vector<16x16xf32>
    %35 = vector.shape_cast %32 : vector<16x16xf32> to vector<1x16x16xf32>
    tpu.vector_store %arg8[%c1_28, %c0_29, %c0_30], %35 {strides = array<i32>} : memref<2x16x16xf32, #tpu.memory_space<vmem>>, vector<1x16x16xf32>,
    return
  }
  func.func @transform_0(%arg0: i32, %arg1: i32) -> (i32, i32, i32, i32) {
    %c0_i32 = arith.constant 0 : i32
    %c0_i32_0 = arith.constant 0 : i32
    %c0_i32_1 = arith.constant 0 : i32
    %c0_i32_2 = arith.constant 0 : i32
    return %arg0, %c0_i32, %c0_i32_0, %c0_i32_1 : i32, i32, i32, i32
  }
  func.func @transform_1(%arg0: i32, %arg1: i32) -> (i32, i32) {
    %c0_i32 = arith.constant 0 : i32
    %c0_i32_0 = arith.constant 0 : i32
    return %arg1, %c0_i32 : i32, i32
  }
  func.func @transform_2(%arg0: i32, %arg1: i32) -> (i32, i32) {
    %c0_i32 = arith.constant 0 : i32
    %c0_i32_0 = arith.constant 0 : i32
    return %arg1, %c0_i32 : i32, i32
  }
  func.func @transform_3(%arg0: i32, %arg1: i32) -> (i32, i32) {
    %c0_i32 = arith.constant 0 : i32
    %c0_i32_0 = arith.constant 0 : i32
    return %arg1, %c0_i32 : i32, i32
  }
  func.func @transform_4(%arg0: i32, %arg1: i32) -> (i32, i32) {
    %c0_i32 = arith.constant 0 : i32
    %c0_i32_0 = arith.constant 0 : i32
    %c0_i32_1 = arith.constant 0 : i32
    return %c0_i32, %c0_i32_0 : i32, i32
  }
  func.func @transform_5(%arg0: i32, %arg1: i32) -> (i32, i32) {
    %c0_i32 = arith.constant 0 : i32
    %c0_i32_0 = arith.constant 0 : i32
    %c0_i32_1 = arith.constant 0 : i32
    return %c0_i32, %c0_i32_0 : i32, i32
  }
  func.func @transform_6(%arg0: i32, %arg1: i32) -> (i32, i32, i32) {
    %c0_i32 = arith.constant 0 : i32
    %c0_i32_0 = arith.constant 0 : i32
    return %arg0, %arg1, %c0_i32 : i32, i32, i32
  }
}

</mosaic_0001>

<llo_original>
// kernel: tpu_custom_call.1
$region0: #{tpu_custom_call.1}
  #allocation0 [shape = 'u32[]', space=smem, size = 0x4, offset = 0x4, fixed_abs, tag = 'smem constant byte address 0x4 - core index']
  #allocation1 [shape = 'u32[144,128]{1,0:T(1,128)}', space=vmem, size = 0x12000, scoped, tag = 'internal scratch']
  #allocation2 [shape = 'bf16[16,256]{1,0:T(8,128)(2,1)}', space=vmem, size = 0x2000, scoped, tag = 'scratch operand']
  %s0 = inlined_call_operand.vmem [shape: bf16[4,2,16,256], index: 0, kind: input, shape index: {}]
  %s1 = inlined_call_operand.vmem [shape: bf16[16,16], index: 1, kind: input, shape index: {}]
  %s2 = inlined_call_operand.hbm [shape: bf16[16,16], index: 2, kind: input, shape index: {}]
  %s3 = inlined_call_operand.hbm [shape: bf16[16,16], index: 3, kind: input, shape index: {}]
  %s4 = inlined_call_operand.vmem [shape: bf16[128,16], index: 4, kind: input, shape index: {}]
  %s5 = inlined_call_operand.vmem [shape: bf16[128,16], index: 5, kind: input, shape index: {}]
  %s6 = inlined_call_operand.hbm [shape: f32[8,16,16], index: 6, kind: output, shape index: {}]
  %s7 = sld [smem:[#allocation0]]
  $region69: #{tpu_custom_call.1} parent=0
    _
  %s9 = ssub.s32 1, %s7
  %s10 = scalar_select 0, %s9, %s7
  $region1: #{tpu_custom_call.1} parent=0
    #allocation3 [shape = 'u8[4096]{0}', space=vmem, size = 0x1000, scoped, tag = 'input window, operand 2, single buffered']
    #allocation4 [shape = 's32[2]{0}', space=sflag, size = 0x8, scoped, tag = 'scoped memory for tpu_custom_call.1']
    #allocation5 [shape = 's32[2]{0}', space=sflag, size = 0x8, scoped, tag = 'scoped memory for tpu_custom_call.1']
    #allocation6 [shape = 'u8[4096]{0}', space=vmem, size = 0x1000, scoped, tag = 'input window, operand 3, single buffered']
    #allocation7 [shape = 's32[1]{0}', space=sflag, size = 0x4, scoped, tag = 'scoped memory for tpu_custom_call.1']
    #allocation8 [shape = 'u8[32768]{0}', space=vmem, size = 0x8000, scoped, tag = 'output window, operand 0']
    %11 = vsyncpa [#allocation4], 0
    %12 = vsyncpa [#allocation7], 0
    %13 = vsyncpa [#allocation5], 0
    %s14 = scalar_lea.sflag [#allocation5], 1
    %15 = vsyncpa %s14, 0
    loop: start=0, step=1, limit=6
    $region2: #{tpu_custom_call.1} parent=1 // loop_pre_header
      _
    $region3: #{tpu_custom_call.1} parent=1 // loop_header
      %s17 = sphi 0, %s21
      %p18 = scmp.ge.s32.totalorder %s17, 6
      %s24 = sphi 0, %s36
      %s25 = sphi 0, %s32
      %s26 = sphi 0, %s24
      %s27 = sphi 0, %s25
      %s28 = sphi 0, %s26
      %s29 = sphi 0, %s27
      %s39 = sphi 0, %s41
      %s42 = sphi 0, %s39
      %s43 = sphi 0, %s42
      %s59 = sphi 0, %s43
      %s65 = sphi 0, %s67
      %s68 = sphi 0, %s65
      %s69 = sphi 0, %s68
      %s85 = sphi 0, %s69
      %s91 = sphi 0, %s93
      %s94 = sphi 0, %s91
      %s95 = sphi 0, %s94
      %s111 = sphi 0, %s95
      %s117 = sphi 0, %s119
      %s120 = sphi 0, %s117
      %s121 = sphi 0, %s120
      %s137 = sphi 0, %s121
      %s141 = sphi 0, %s141
      %s143 = sphi 0, %s141
      %s144 = sphi 0, %s143
      %s158 = sphi 0, %s144
      %s162 = sphi 0, %s162
      %s164 = sphi 0, %s162
      %s165 = sphi 0, %s164
      %s179 = sphi 0, %s165
      %s187 = sphi 0, %s189
      %s190 = sphi 0, %s187
      %s191 = sphi 0, %s190
      %s207 = sphi 0, %s191
    $region4: #{tpu_custom_call.1} parent=1 // loop_header_branch
      %20 = sbr.rel (%p18) target = $region8
    $region5: #{tpu_custom_call.1} parent=1 // loop_body
      %s22 = ssub.s32 %s17, 1
      %s23 = ssub.s32 %s17, 2
      %s30 = sadd.s32 1, %s25
      %p31 = scmp.ge.s32.totalorder %s30, 1
      %s32 = scalar_select %p31, 0, %s30
      %s33 = sadd.s32 1, %s24
      %s34 = scalar_select %p31, %s33, %s24
      %p35 = scmp.ge.s32.totalorder %s34, 4
      %s36 = scalar_select %p35, 0, %s34
      %s37 = ssub.s32 %s24, %s36
      %p38 = scmp.eq.s32.totalorder %s37, 0
      %s40 = sadd.s32 %s39, 1
      %s41 = scalar_select %p38, %s39, %s40
      %p44 = pneg %p38
      %p45 = scmp.eq.s32.totalorder %s17, 3
      %p46 = por %p44, %p45
      %p47 = scmp.ne.s32.totalorder %s39, %s42
      %p48 = scmp.eq.s32.totalorder %s17, 0
      %p49 = por %p47, %p48
      %p50 = scmp.ne.s32.totalorder %s39, %s42
      %p51 = scmp.eq.s32.totalorder %s22, 3
      %p52 = por %p50, %p51
      %p53 = scmp.ne.s32.totalorder %s42, %s43
      %p54 = scmp.eq.s32.totalorder %s22, 0
      %p55 = por %p53, %p54
      %p56 = scmp.ne.s32.totalorder %s42, %s43
      %p57 = scmp.eq.s32.totalorder %s23, 3
      %p58 = por %p56, %p57
      %p60 = scmp.ne.s32.totalorder %s43, %s59
      %p61 = scmp.eq.s32.totalorder %s23, 0
      %p62 = por %p60, %p61
      %s63 = ssub.s32 %s25, %s32
      %p64 = scmp.eq.s32.totalorder %s63, 0
      %s66 = sadd.s32 %s65, 1
      %s67 = scalar_select %p64, %s65, %s66
      %p70 = pneg %p64
      %p71 = scmp.eq.s32.totalorder %s17, 3
      %p72 = por %p70, %p71
      %p73 = scmp.ne.s32.totalorder %s65, %s68
      %p74 = scmp.eq.s32.totalorder %s17, 0
      %p75 = por %p73, %p74
      %p76 = scmp.ne.s32.totalorder %s65, %s68
      %p77 = scmp.eq.s32.totalorder %s22, 3
      %p78 = por %p76, %p77
      %p79 = scmp.ne.s32.totalorder %s68, %s69
      %p80 = scmp.eq.s32.totalorder %s22, 0
      %p81 = por %p79, %p80
      %p82 = scmp.ne.s32.totalorder %s68, %s69
      %p83 = scmp.eq.s32.totalorder %s23, 3
      %p84 = por %p82, %p83
      %p86 = scmp.ne.s32.totalorder %s69, %s85
      %p87 = scmp.eq.s32.totalorder %s23, 0
      %p88 = por %p86, %p87
      %s89 = ssub.s32 %s25, %s32
      %p90 = scmp.eq.s32.totalorder %s89, 0
      %s92 = sadd.s32 %s91, 1
      %s93 = scalar_select %p90, %s91, %s92
      %p96 = pneg %p90
      %p97 = scmp.eq.s32.totalorder %s17, 3
      %p98 = por %p96, %p97
      %p99 = scmp.ne.s32.totalorder %s91, %s94
      %p100 = scmp.eq.s32.totalorder %s17, 0
      %p101 = por %p99, %p100
      %p102 = scmp.ne.s32.totalorder %s91, %s94
      %p103 = scmp.eq.s32.totalorder %s22, 3
      %p104 = por %p102, %p103
      %p105 = scmp.ne.s32.totalorder %s94, %s95
      %p106 = scmp.eq.s32.totalorder %s22, 0
      %p107 = por %p105, %p106
      %p108 = scmp.ne.s32.totalorder %s94, %s95
      %p109 = scmp.eq.s32.totalorder %s23, 3
      %p110 = por %p108, %p109
      %p112 = scmp.ne.s32.totalorder %s95, %s111
      %p113 = scmp.eq.s32.totalorder %s23, 0
      %p114 = por %p112, %p113
      %s115 = ssub.s32 %s25, %s32
      %p116 = scmp.eq.s32.totalorder %s115, 0
      %s118 = sadd.s32 %s117, 1
      %s119 = scalar_select %p116, %s117, %s118
      %p122 = pneg %p116
      %p123 = scmp.eq.s32.totalorder %s17, 3
      %p124 = por %p122, %p123
      %p125 = scmp.ne.s32.totalorder %s117, %s120
      %p126 = scmp.eq.s32.totalorder %s17, 0
      %p127 = por %p125, %p126
      %p128 = scmp.ne.s32.totalorder %s117, %s120
      %p129 = scmp.eq.s32.totalorder %s22, 3
      %p130 = por %p128, %p129
      %p131 = scmp.ne.s32.totalorder %s120, %s121
      %p132 = scmp.eq.s32.totalorder %s22, 0
      %p133 = por %p131, %p132
      %p134 = scmp.ne.s32.totalorder %s120, %s121
      %p135 = scmp.eq.s32.totalorder %s23, 3
      %p136 = por %p134, %p135
      %p138 = scmp.ne.s32.totalorder %s121, %s137
      %p139 = scmp.eq.s32.totalorder %s23, 0
      %p140 = por %p138, %p139
      %s142 = sadd.s32 %s141, 1
      %p145 = scmp.eq.s32.totalorder %s17, 3
      %p146 = scmp.ne.s32.totalorder %s141, %s143
      %p147 = scmp.eq.s32.totalorder %s17, 0
      %p148 = por %p146, %p147
      %p149 = scmp.ne.s32.totalorder %s141, %s143
      %p150 = scmp.eq.s32.totalorder %s22, 3
      %p151 = por %p149, %p150
      %p152 = scmp.ne.s32.totalorder %s143, %s144
      %p153 = scmp.eq.s32.totalorder %s22, 0
      %p154 = por %p152, %p153
      %p155 = scmp.ne.s32.totalorder %s143, %s144
      %p156 = scmp.eq.s32.totalorder %s23, 3
      %p157 = por %p155, %p156
      %p159 = scmp.ne.s32.totalorder %s144, %s158
      %p160 = scmp.eq.s32.totalorder %s23, 0
      %p161 = por %p159, %p160
      %s163 = sadd.s32 %s162, 1
      %p166 = scmp.eq.s32.totalorder %s17, 3
      %p167 = scmp.ne.s32.totalorder %s162, %s164
      %p168 = scmp.eq.s32.totalorder %s17, 0
      %p169 = por %p167, %p168
      %p170 = scmp.ne.s32.totalorder %s162, %s164
      %p171 = scmp.eq.s32.totalorder %s22, 3
      %p172 = por %p170, %p171
      %p173 = scmp.ne.s32.totalorder %s164, %s165
      %p174 = scmp.eq.s32.totalorder %s22, 0
      %p175 = por %p173, %p174
      %p176 = scmp.ne.s32.totalorder %s164, %s165
      %p177 = scmp.eq.s32.totalorder %s23, 3
      %p178 = por %p176, %p177
      %p180 = scmp.ne.s32.totalorder %s165, %s179
      %p181 = scmp.eq.s32.totalorder %s23, 0
      %p182 = por %p180, %p181
      %s183 = ssub.s32 %s24, %s36
      %s184 = ssub.s32 %s25, %s32
      %s185 = sor.u32 %s183, %s184
      %p186 = scmp.eq.s32.totalorder %s185, 0
      %s188 = sadd.s32 %s187, 1
      %s189 = scalar_select %p186, %s187, %s188
      %p192 = pneg %p186
      %p193 = scmp.eq.s32.totalorder %s17, 3
      %p194 = por %p192, %p193
      %p195 = scmp.ne.s32.totalorder %s187, %s190
      %p196 = scmp.eq.s32.totalorder %s17, 0
      %p197 = por %p195, %p196
      %p198 = scmp.ne.s32.totalorder %s187, %s190
      %p199 = scmp.eq.s32.totalorder %s22, 3
      %p200 = por %p198, %p199
      %p201 = scmp.ne.s32.totalorder %s190, %s191
      %p202 = scmp.eq.s32.totalorder %s22, 0
      %p203 = por %p201, %p202
      %p204 = scmp.ne.s32.totalorder %s190, %s191
      %p205 = scmp.eq.s32.totalorder %s23, 3
      %p206 = por %p204, %p205
      %p208 = scmp.ne.s32.totalorder %s191, %s207
      %p209 = scmp.eq.s32.totalorder %s23, 0
      %p210 = por %p208, %p209
      %p211 = scmp.le.s32.totalorder 1, %s17
      %p212 = scmp.lt.s32.totalorder %s17, 5
      %p213 = pnand %p211, %p212
      %p214 = pneg %p213
      // Predicated region
      $region9: #{tpu_custom_call.1} parent=5 // pred_check
        _
      $region10: #{tpu_custom_call.1} parent=5 // pred_check_branch
        %216 = sbr.rel (%p213) target = $region12
      $region11: #{tpu_custom_call.1} parent=5 // pred_region
        %s217 = ssub.s32 %s17, 1
        // Predicated region
        $region13: #{tpu_custom_call.1} parent=11 // pred_check
          %p218 = pneg %p81
        $region14: #{tpu_custom_call.1} parent=11 // pred_check_branch
          %220 = sbr.rel (%p218) target = $region16
        $region15: #{tpu_custom_call.1} parent=11 // pred_region
          %s221 = smul.u32 2, %s27
          %p222 = scmp.lt.s32.totalorder %s221, 1
          %s223 = scalar_select %p222, %s221, 1
          %s224 = smul.addr %s223, 4
          %s225 = scalar_lea.vmem %s1, %s224
          %s226 = smul.u32 2, %s27
        $region16: #{tpu_custom_call.1} parent=11 // pred_fallthru
          _
        // Predicated region
        $region17: #{tpu_custom_call.1} parent=11 // pred_check
          %p227 = pneg %p107
        $region18: #{tpu_custom_call.1} parent=11 // pred_check_branch
          %229 = sbr.rel (%p227) target = $region20
        $region19: #{tpu_custom_call.1} parent=11 // pred_region
          %s230 = smul.u32 2, %s27
          %s232 = ssub.s32 128, 128
          %233 = vsyncadd [#allocation4], %s232
          %s234 = smul.addr %s230, 64
          %s235 = scalar_lea.hbm %s2, %s234
          %s236 = sshll.u32 [#allocation3], 4
          %s237 = int_to_ptr.vmem [resolvable:$true] %s236
          %242 = dma.hbm_to_vmem [thread:$0]  %s235, 128, %s237, [#allocation4], 64, 64, 4
        $region20: #{tpu_custom_call.1} parent=11 // pred_fallthru
          _
        // Predicated region
        $region21: #{tpu_custom_call.1} parent=11 // pred_check
          %p243 = pneg %p133
        $region22: #{tpu_custom_call.1} parent=11 // pred_check_branch
          %245 = sbr.rel (%p243) target = $region24
        $region23: #{tpu_custom_call.1} parent=11 // pred_region
          %s246 = smul.u32 2, %s27
          %s248 = ssub.s32 128, 128
          %249 = vsyncadd [#allocation7], %s248
          %s250 = smul.addr %s246, 64
          %s251 = scalar_lea.hbm %s3, %s250
          %s252 = sshll.u32 [#allocation6], 4
          %s253 = int_to_ptr.vmem [resolvable:$true] %s252
          %258 = dma.hbm_to_vmem [thread:$0]  %s251, 128, %s253, [#allocation7], 64, 64, 4
        $region24: #{tpu_custom_call.1} parent=11 // pred_fallthru
          _
        // Predicated region
        $region25: #{tpu_custom_call.1} parent=11 // pred_check
          %p259 = pneg %p154
        $region26: #{tpu_custom_call.1} parent=11 // pred_check_branch
          %261 = sbr.rel (%p259) target = $region28
        $region27: #{tpu_custom_call.1} parent=11 // pred_region
          _
        $region28: #{tpu_custom_call.1} parent=11 // pred_fallthru
          _
        // Predicated region
        $region29: #{tpu_custom_call.1} parent=11 // pred_check
          %p262 = pneg %p175
        $region30: #{tpu_custom_call.1} parent=11 // pred_check_branch
          %264 = sbr.rel (%p262) target = $region32
        $region31: #{tpu_custom_call.1} parent=11 // pred_region
          _
        $region32: #{tpu_custom_call.1} parent=11 // pred_fallthru
          _
      $region12: #{tpu_custom_call.1} parent=5 // pred_fallthru
        _
      %p265 = scmp.lt.s32.totalorder %s17, 4
      // Predicated region
      $region33: #{tpu_custom_call.1} parent=5 // pred_check
        %p266 = pneg %p265
      $region34: #{tpu_custom_call.1} parent=5 // pred_check_branch
        %268 = sbr.rel (%p266) target = $region36
      $region35: #{tpu_custom_call.1} parent=5 // pred_region
        // Predicated region
        $region37: #{tpu_custom_call.1} parent=35 // pred_check
          %p269 = pneg %p49
        $region38: #{tpu_custom_call.1} parent=35 // pred_check_branch
          %271 = sbr.rel (%p269) target = $region40
        $region39: #{tpu_custom_call.1} parent=35 // pred_region
          %p272 = scmp.lt.s32.totalorder %s24, 3
          %s273 = scalar_select %p272, %s24, 3
          %s274 = smul.addr %s273, 8
          %s275 = smul.addr %s274, 4
          %s276 = scalar_lea.vmem %s0, %s275
        $region40: #{tpu_custom_call.1} parent=35 // pred_fallthru
          _
      $region36: #{tpu_custom_call.1} parent=5 // pred_fallthru
        _
      %p277 = scmp.le.s32.totalorder 1, %s17
      %p278 = scmp.lt.s32.totalorder %s17, 5
      %p279 = pnand %p277, %p278
      %p280 = pneg %p279
      // Predicated region
      $region41: #{tpu_custom_call.1} parent=5 // pred_check
        _
      $region42: #{tpu_custom_call.1} parent=5 // pred_check_branch
        %282 = sbr.rel (%p279) target = $region44
      $region43: #{tpu_custom_call.1} parent=5 // pred_region
        %s283 = ssub.s32 %s17, 1
        // Predicated region
        $region45: #{tpu_custom_call.1} parent=43 // pred_check
          %p284 = pneg %p107
        $region46: #{tpu_custom_call.1} parent=43 // pred_check_branch
          %286 = sbr.rel (%p284) target = $region48
        $region47: #{tpu_custom_call.1} parent=43 // pred_region
          %287 = dma.done [#allocation4], 128
        $region48: #{tpu_custom_call.1} parent=43 // pred_fallthru
          _
        // Predicated region
        $region49: #{tpu_custom_call.1} parent=43 // pred_check
          %p288 = pneg %p133
        $region50: #{tpu_custom_call.1} parent=43 // pred_check_branch
          %290 = sbr.rel (%p288) target = $region52
        $region51: #{tpu_custom_call.1} parent=43 // pred_region
          %291 = dma.done [#allocation7], 128
        $region52: #{tpu_custom_call.1} parent=43 // pred_fallthru
          _
        %p292 = scmp.lt.s32.totalorder %s26, 3
        %s293 = scalar_select %p292, %s26, 3
        %s294 = smul.addr %s293, 8
        %s295 = smul.addr %s294, 4
        %s296 = scalar_lea.vmem %s0, %s295
        %p297 = pneg %p55
        %p298 = pneg %p52
        %s299 = smul.u32 2, %s27
        %p300 = scmp.lt.s32.totalorder %s299, 1
        %s301 = scalar_select %p300, %s299, 1
        %s302 = smul.addr %s301, 4
        %s303 = scalar_lea.vmem %s1, %s302
        %p304 = pneg %p81
        %p305 = pneg %p78
        %p306 = pneg %p107
        %p307 = pneg %p104
        %p308 = pneg %p133
        %p309 = pneg %p130
        %p310 = pneg %p154
        %p311 = pneg %p151
        %p312 = pneg %p175
        %p313 = pneg %p172
        %p314 = pneg %p203
        %p315 = pneg %p200
        %s316 = sand.u32 %s190, 1
        %s317 = scalar_lea.sflag [#allocation5], %s316
        %s318 = sand.u32 %s190, 1
        %s319 = smul.addr %s318, 32
        %s320 = scalar_lea.vmem [#allocation8], %s319
        %p321 = scmp.lt.s32.totalorder %s26, 3
        %s322 = scalar_select %p321, %s26, 3
        %s323 = smul.addr %s322, 8
        %s324 = smul.addr %s323, 4
        %s325 = scalar_lea.vmem %s0, %s324
        %s326 = smul.u32 2, %s27
        %p327 = scmp.lt.s32.totalorder %s326, 1
        %s328 = scalar_select %p327, %s326, 1
        %s329 = smul.addr %s328, 4
        %s330 = scalar_lea.vmem %s1, %s329
        %s331 = smul.u32 2, %s27
        %s332 = smul.u32 2, %s27
        %s333 = smul.u32 2, %s27
        %s334 = smul.u32 2, %s26
        %s335 = smul.u32 2, %s27
        %v337 = vld [vmem:[%s325] sm:$0xff]
        %v338 = vld [vmem:[%s325 + $0x8] sm:$0xff]
        %s339 = scalar_lea.vmem %s325, 16
        %v340 = vld [vmem:[%s339] sm:$0xff]
        %v341 = vld [vmem:[%s339 + $0x8] sm:$0xff]
        %p342 = scmp.eq.s32.totalorder %s27, 0
        // Predicated region
        $region53: #{tpu_custom_call.1} parent=43 // pred_check
          %p343 = pneg %p342
        $region54: #{tpu_custom_call.1} parent=43 // pred_check_branch
          %345 = sbr.rel (%p343) target = $region56
        $region55: #{tpu_custom_call.1} parent=43 // pred_region
          %v346 = vadd.bf16 %v337, %v340
          %v347 = vadd.bf16 %v338, %v341
          %348 = vst [vmem:[#allocation2] sm:$0xff] %v346
          %349 = vst [vmem:[#allocation2 + $0x8] sm:$0xff] %v347
        $region56: #{tpu_custom_call.1} parent=43 // pred_fallthru
          _
        %v350 = vld [vmem:[%s330] sm:$0xf]
        %v351 = vld [vmem:[%s330 + $0x4] sm:$0xf]
        %v352 = vld [vmem:[#allocation2] sm:$0xff]
        %v353 = vld [vmem:[#allocation2 + $0x8] sm:$0xff]
        %v356 = vunpack.c.l.b16 %v350
        %v357 = vunpack.c.l.b16 %v351
        %v358 = vpack.c.b16 %v357, %v356
        %v361 = vunpack.c.l.b16 %v352
        %v362 = vunpack.c.h.b16 %v352
        %v363 = vunpack.c.l.b16 %v353
        %v364 = vunpack.c.h.b16 %v353
        %v365 = vpack.c.b16 %v363, %v361
        %v366 = vpack.c.b16 %v364, %v362
        %vm369 = vcmask 130048
        %v371 = vsel %vm369, %v358, 0
        %373 = vmatprep.subr.bf16.mxu0 0
        %374 = vmatpush1.bf16.msra.mxu0 0
        %375 = vmatprep.subr.bf16.mxu0 0
        %376 = vmatpush1.bf16.msra.mxu0 0
        %377 = vmatprep.subr.bf16.mxu0 0
        %378 = vmatpush1.bf16.msra.mxu0 0
        %379 = vmatprep.subr.bf16.mxu0 0
        %380 = vmatpush1.bf16.msra.mxu0 0
        %381 = vmatprep.subr.bf16.mxu0 0
        %382 = vmatpush1.bf16.msra.mxu0 0
        %383 = vmatprep.subr.bf16.mxu0 0
        %384 = vmatpush1.bf16.msra.mxu0 0
        %385 = vmatprep.subr.bf16.mxu0 0
        %386 = vmatpush1.bf16.msra.mxu0 0
        %387 = vmatprep.subr.bf16.mxu0 %v366
        %388 = vmatpush1.bf16.msra.mxu0 %v365
        %389 = vmatprep.subr.bf16.mxu0 0
        %390 = vmatpush2.bf16.msra.mxu0 0
        %391 = vmatprep.subr.bf16.mxu0 0
        %392 = vmatpush2.bf16.msra.mxu0 0
        %393 = vmatprep.subr.bf16.mxu0 0
        %394 = vmatpush2.bf16.msra.mxu0 0
        %395 = vmatprep.subr.bf16.mxu0 0
        %396 = vmatpush2.bf16.msra.mxu0 0
        %397 = vmatprep.subr.bf16.mxu0 0
        %398 = vmatpush2.bf16.msra.mxu0 0
        %399 = vmatprep.subr.bf16.mxu0 0
        %400 = vmatpush2.bf16.msra.mxu0 0
        %401 = vmatprep.subr.bf16.mxu0 0
        %402 = vmatpush2.bf16.msra.mxu0 0
        %403 = vmatprep.subr.bf16.mxu0 0
        %404 = vmatpush2.bf16.msra.mxu0 0
        %405 = vmatprep.mubr.bf16.mxu0 0
        %406 = vmatmul.mubr.bf16.gmra.mxu0 %v371
        %v407 = vpop.f32.mrf.mxu0
        %v408 = vadd.f32 0.0, %v407
        %v409 = vpop.f32.mrf.mxu0
        %v410 = vadd.f32 0.0, %v409
        %v411 = vpop.f32.mrf.mxu0
        %v412 = vadd.f32 0.0, %v411
        %v413 = vpop.f32.mrf.mxu0
        %v414 = vadd.f32 0.0, %v413
        %415 = vdwg.mxu0
        %v416 = vld [vmem:[#allocation3] sm:$0xf]
        %v417 = vld [vmem:[#allocation3 + $0x4] sm:$0xf]
        %v420 = vunpack.c.l.b16 %v416
        %v421 = vunpack.c.l.b16 %v417
        %v422 = vpack.c.b16 %v421, %v420
        %v425 = vunpack.c.l.b16 %v340
        %v426 = vunpack.c.h.b16 %v340
        %v427 = vunpack.c.l.b16 %v341
        %v428 = vunpack.c.h.b16 %v341
        %v429 = vpack.c.b16 %v427, %v425
        %v430 = vpack.c.b16 %v428, %v426
        %v434 = vsel %vm369, %v422, 0
        %436 = vmatprep.subr.bf16.mxu0 0
        %437 = vmatpush1.bf16.msra.mxu0 0
        %438 = vmatprep.subr.bf16.mxu0 0
        %439 = vmatpush1.bf16.msra.mxu0 0
        %440 = vmatprep.subr.bf16.mxu0 0
        %441 = vmatpush1.bf16.msra.mxu0 0
        %442 = vmatprep.subr.bf16.mxu0 0
        %443 = vmatpush1.bf16.msra.mxu0 0
        %444 = vmatprep.subr.bf16.mxu0 0
        %445 = vmatpush1.bf16.msra.mxu0 0
        %446 = vmatprep.subr.bf16.mxu0 0
        %447 = vmatpush1.bf16.msra.mxu0 0
        %448 = vmatprep.subr.bf16.mxu0 0
        %449 = vmatpush1.bf16.msra.mxu0 0
        %450 = vmatprep.subr.bf16.mxu0 %v430
        %451 = vmatpush1.bf16.msra.mxu0 %v429
        %452 = vmatprep.subr.bf16.mxu0 0
        %453 = vmatpush2.bf16.msra.mxu0 0
        %454 = vmatprep.subr.bf16.mxu0 0
        %455 = vmatpush2.bf16.msra.mxu0 0
        %456 = vmatprep.subr.bf16.mxu0 0
        %457 = vmatpush2.bf16.msra.mxu0 0
        %458 = vmatprep.subr.bf16.mxu0 0
        %459 = vmatpush2.bf16.msra.mxu0 0
        %460 = vmatprep.subr.bf16.mxu0 0
        %461 = vmatpush2.bf16.msra.mxu0 0
        %462 = vmatprep.subr.bf16.mxu0 0
        %463 = vmatpush2.bf16.msra.mxu0 0
        %464 = vmatprep.subr.bf16.mxu0 0
        %465 = vmatpush2.bf16.msra.mxu0 0
        %466 = vmatprep.subr.bf16.mxu0 0
        %467 = vmatpush2.bf16.msra.mxu0 0
        %468 = vmatprep.mubr.bf16.mxu0 0
        %469 = vmatmul.mubr.bf16.gmra.mxu0 %v434
        %v470 = vpop.f32.mrf.mxu0
        %v471 = vadd.f32 0.0, %v470
        %v472 = vpop.f32.mrf.mxu0
        %v473 = vadd.f32 0.0, %v472
        %v474 = vpop.f32.mrf.mxu0
        %v475 = vadd.f32 0.0, %v474
        %v476 = vpop.f32.mrf.mxu0
        %v477 = vadd.f32 0.0, %v476
        %478 = vdwg.mxu0
        %v479 = vld [vmem:[#allocation6] sm:$0xf]
        %v480 = vld [vmem:[#allocation6 + $0x4] sm:$0xf]
        %v483 = vunpack.c.l.b16 %v479
        %v484 = vunpack.c.l.b16 %v480
        %v485 = vpack.c.b16 %v484, %v483
        %v488 = vunpack.c.l.b16 %v337
        %v489 = vunpack.c.h.b16 %v337
        %v490 = vunpack.c.l.b16 %v338
        %v491 = vunpack.c.h.b16 %v338
        %v492 = vpack.c.b16 %v490, %v488
        %v493 = vpack.c.b16 %v491, %v489
        %v497 = vsel %vm369, %v485, 0
        %499 = vmatprep.subr.bf16.mxu0 0
        %500 = vmatpush1.bf16.msra.mxu0 0
        %501 = vmatprep.subr.bf16.mxu0 0
        %502 = vmatpush1.bf16.msra.mxu0 0
        %503 = vmatprep.subr.bf16.mxu0 0
        %504 = vmatpush1.bf16.msra.mxu0 0
        %505 = vmatprep.subr.bf16.mxu0 0
        %506 = vmatpush1.bf16.msra.mxu0 0
        %507 = vmatprep.subr.bf16.mxu0 0
        %508 = vmatpush1.bf16.msra.mxu0 0
        %509 = vmatprep.subr.bf16.mxu0 0
        %510 = vmatpush1.bf16.msra.mxu0 0
        %511 = vmatprep.subr.bf16.mxu0 0
        %512 = vmatpush1.bf16.msra.mxu0 0
        %513 = vmatprep.subr.bf16.mxu0 %v493
        %514 = vmatpush1.bf16.msra.mxu0 %v492
        %515 = vmatprep.subr.bf16.mxu0 0
        %516 = vmatpush2.bf16.msra.mxu0 0
        %517 = vmatprep.subr.bf16.mxu0 0
        %518 = vmatpush2.bf16.msra.mxu0 0
        %519 = vmatprep.subr.bf16.mxu0 0
        %520 = vmatpush2.bf16.msra.mxu0 0
        %521 = vmatprep.subr.bf16.mxu0 0
        %522 = vmatpush2.bf16.msra.mxu0 0
        %523 = vmatprep.subr.bf16.mxu0 0
        %524 = vmatpush2.bf16.msra.mxu0 0
        %525 = vmatprep.subr.bf16.mxu0 0
        %526 = vmatpush2.bf16.msra.mxu0 0
        %527 = vmatprep.subr.bf16.mxu0 0
        %528 = vmatpush2.bf16.msra.mxu0 0
        %529 = vmatprep.subr.bf16.mxu0 0
        %530 = vmatpush2.bf16.msra.mxu0 0
        %531 = vmatprep.mubr.bf16.mxu0 0
        %532 = vmatmul.mubr.bf16.gmra.mxu0 %v497
        %v533 = vpop.f32.mrf.mxu0
        %v534 = vadd.f32 0.0, %v533
        %v535 = vpop.f32.mrf.mxu0
        %v536 = vadd.f32 0.0, %v535
        %v537 = vpop.f32.mrf.mxu0
        %v538 = vadd.f32 0.0, %v537
        %v539 = vpop.f32.mrf.mxu0
        %v540 = vadd.f32 0.0, %v539
        %541 = vdwg.mxu0
        %v542 = vsub.f32 %v408, %v471
        %v543 = vsub.f32 %v410, %v473
        %v544 = vsub.f32 %v412, %v475
        %v545 = vsub.f32 %v414, %v477
        %v546 = vpack.c.bf16 %v544, %v542
        %v547 = vpack.c.bf16 %v545, %v543
        %v548 = vsub.f32 %v408, %v534
        %v549 = vsub.f32 %v410, %v536
        %v550 = vsub.f32 %v412, %v538
        %v551 = vsub.f32 %v414, %v540
        %v552 = vpack.c.bf16 %v550, %v548
        %v553 = vpack.c.bf16 %v551, %v549
        %v554 = vld [vmem:[%s4] sm:$0xf]
        %v555 = vld [vmem:[%s4 + $0x4] sm:$0xf]
        %v556 = vld [vmem:[%s4 + $0x8] sm:$0xf]
        %v557 = vld [vmem:[%s4 + $0xc] sm:$0xf]
        %v558 = vld [vmem:[%s4 + $0x10] sm:$0xf]
        %v559 = vld [vmem:[%s4 + $0x14] sm:$0xf]
        %v560 = vld [vmem:[%s4 + $0x18] sm:$0xf]
        %v561 = vld [vmem:[%s4 + $0x1c] sm:$0xf]
        %v562 = vld [vmem:[%s4 + $0x20] sm:$0xf]
        %v563 = vld [vmem:[%s4 + $0x24] sm:$0xf]
        %v564 = vld [vmem:[%s4 + $0x28] sm:$0xf]
        %v565 = vld [vmem:[%s4 + $0x2c] sm:$0xf]
        %v566 = vld [vmem:[%s4 + $0x30] sm:$0xf]
        %v567 = vld [vmem:[%s4 + $0x34] sm:$0xf]
        %v568 = vld [vmem:[%s4 + $0x38] sm:$0xf]
        %v569 = vld [vmem:[%s4 + $0x3c] sm:$0xf]
        %v570 = vld [vmem:[%s5] sm:$0xf]
        %v571 = vld [vmem:[%s5 + $0x4] sm:$0xf]
        %v572 = vld [vmem:[%s5 + $0x8] sm:$0xf]
        %v573 = vld [vmem:[%s5 + $0xc] sm:$0xf]
        %v574 = vld [vmem:[%s5 + $0x10] sm:$0xf]
        %v575 = vld [vmem:[%s5 + $0x14] sm:$0xf]
        %v576 = vld [vmem:[%s5 + $0x18] sm:$0xf]
        %v577 = vld [vmem:[%s5 + $0x1c] sm:$0xf]
        %v578 = vld [vmem:[%s5 + $0x20] sm:$0xf]
        %v579 = vld [vmem:[%s5 + $0x24] sm:$0xf]
        %v580 = vld [vmem:[%s5 + $0x28] sm:$0xf]
        %v581 = vld [vmem:[%s5 + $0x2c] sm:$0xf]
        %v582 = vld [vmem:[%s5 + $0x30] sm:$0xf]
        %v583 = vld [vmem:[%s5 + $0x34] sm:$0xf]
        %v584 = vld [vmem:[%s5 + $0x38] sm:$0xf]
        %v585 = vld [vmem:[%s5 + $0x3c] sm:$0xf]
        %v602 = vunpack.c.l.b16 %v570
        %v603 = vunpack.c.l.b16 %v571
        %v604 = vunpack.c.l.b16 %v572
        %v605 = vunpack.c.l.b16 %v573
        %v606 = vunpack.c.l.b16 %v574
        %v607 = vunpack.c.l.b16 %v575
        %v608 = vunpack.c.l.b16 %v576
        %v609 = vunpack.c.l.b16 %v577
        %v610 = vunpack.c.l.b16 %v578
        %v611 = vunpack.c.l.b16 %v579
        %v612 = vunpack.c.l.b16 %v580
        %v613 = vunpack.c.l.b16 %v581
        %v614 = vunpack.c.l.b16 %v582
        %v615 = vunpack.c.l.b16 %v583
        %v616 = vunpack.c.l.b16 %v584
        %v617 = vunpack.c.l.b16 %v585
        %v618 = vpack.c.b16 %v603, %v602
        %v619 = vpack.c.b16 %v605, %v604
        %v620 = vpack.c.b16 %v607, %v606
        %v621 = vpack.c.b16 %v609, %v608
        %v622 = vpack.c.b16 %v611, %v610
        %v623 = vpack.c.b16 %v613, %v612
        %v624 = vpack.c.b16 %v615, %v614
        %v625 = vpack.c.b16 %v617, %v616
        %634 = vmatprep.subr.bf16.mxu0 0
        %635 = vmatpush1.bf16.msra.mxu0 %v625
        %636 = vmatprep.subr.bf16.mxu0 0
        %637 = vmatpush1.bf16.msra.mxu0 %v624
        %638 = vmatprep.subr.bf16.mxu0 0
        %639 = vmatpush1.bf16.msra.mxu0 %v623
        %640 = vmatprep.subr.bf16.mxu0 0
        %641 = vmatpush1.bf16.msra.mxu0 %v622
        %642 = vmatprep.subr.bf16.mxu0 0
        %643 = vmatpush1.bf16.msra.mxu0 %v621
        %644 = vmatprep.subr.bf16.mxu0 0
        %645 = vmatpush1.bf16.msra.mxu0 %v620
        %646 = vmatprep.subr.bf16.mxu0 0
        %647 = vmatpush1.bf16.msra.mxu0 %v619
        %648 = vmatprep.subr.bf16.mxu0 0
        %649 = vmatpush1.bf16.msra.mxu0 %v618
        %650 = vmatprep.subr.bf16.mxu0 0
        %651 = vmatpush2.bf16.msra.mxu0 0
        %652 = vmatprep.subr.bf16.mxu0 0
        %653 = vmatpush2.bf16.msra.mxu0 0
        %654 = vmatprep.subr.bf16.mxu0 0
        %655 = vmatpush2.bf16.msra.mxu0 0
        %656 = vmatprep.subr.bf16.mxu0 0
        %657 = vmatpush2.bf16.msra.mxu0 0
        %658 = vmatprep.subr.bf16.mxu0 0
        %659 = vmatpush2.bf16.msra.mxu0 0
        %660 = vmatprep.subr.bf16.mxu0 0
        %661 = vmatpush2.bf16.msra.mxu0 0
        %662 = vmatprep.subr.bf16.mxu0 0
        %663 = vmatpush2.bf16.msra.mxu0 0
        %664 = vmatprep.subr.bf16.mxu0 0
        %665 = vmatpush2.bf16.msra.mxu0 0
        %666 = vmatprep.mubr.bf16.mxu0 0
        %667 = vmatmul.mubr.bf16.gmra.mxu0 %v552
        %v668 = vpop.f32.mrf.mxu0
        %v669 = vadd.f32 0.0, %v668
        %v670 = vpop.f32.mrf.mxu0
        %v671 = vpop.f32.mrf.mxu0
        %v672 = vadd.f32 0.0, %v671
        %v673 = vpop.f32.mrf.mxu0
        %674 = vdwg.mxu0
        %v691 = vunpack.c.l.b16 %v554
        %v692 = vunpack.c.l.b16 %v555
        %v693 = vunpack.c.l.b16 %v556
        %v694 = vunpack.c.l.b16 %v557
        %v695 = vunpack.c.l.b16 %v558
        %v696 = vunpack.c.l.b16 %v559
        %v697 = vunpack.c.l.b16 %v560
        %v698 = vunpack.c.l.b16 %v561
        %v699 = vunpack.c.l.b16 %v562
        %v700 = vunpack.c.l.b16 %v563
        %v701 = vunpack.c.l.b16 %v564
        %v702 = vunpack.c.l.b16 %v565
        %v703 = vunpack.c.l.b16 %v566
        %v704 = vunpack.c.l.b16 %v567
        %v705 = vunpack.c.l.b16 %v568
        %v706 = vunpack.c.l.b16 %v569
        %v707 = vpack.c.b16 %v692, %v691
        %v708 = vpack.c.b16 %v694, %v693
        %v709 = vpack.c.b16 %v696, %v695
        %v710 = vpack.c.b16 %v698, %v697
        %v711 = vpack.c.b16 %v700, %v699
        %v712 = vpack.c.b16 %v702, %v701
        %v713 = vpack.c.b16 %v704, %v703
        %v714 = vpack.c.b16 %v706, %v705
        %723 = vmatprep.subr.bf16.mxu0 0
        %724 = vmatpush1.bf16.msra.mxu0 %v714
        %725 = vmatprep.subr.bf16.mxu0 0
        %726 = vmatpush1.bf16.msra.mxu0 %v713
        %727 = vmatprep.subr.bf16.mxu0 0
        %728 = vmatpush1.bf16.msra.mxu0 %v712
        %729 = vmatprep.subr.bf16.mxu0 0
        %730 = vmatpush1.bf16.msra.mxu0 %v711
        %731 = vmatprep.subr.bf16.mxu0 0
        %732 = vmatpush1.bf16.msra.mxu0 %v710
        %733 = vmatprep.subr.bf16.mxu0 0
        %734 = vmatpush1.bf16.msra.mxu0 %v709
        %735 = vmatprep.subr.bf16.mxu0 0
        %736 = vmatpush1.bf16.msra.mxu0 %v708
        %737 = vmatprep.subr.bf16.mxu0 0
        %738 = vmatpush1.bf16.msra.mxu0 %v707
        %739 = vmatprep.subr.bf16.mxu0 0
        %740 = vmatpush2.bf16.msra.mxu0 0
        %741 = vmatprep.subr.bf16.mxu0 0
        %742 = vmatpush2.bf16.msra.mxu0 0
        %743 = vmatprep.subr.bf16.mxu0 0
        %744 = vmatpush2.bf16.msra.mxu0 0
        %745 = vmatprep.subr.bf16.mxu0 0
        %746 = vmatpush2.bf16.msra.mxu0 0
        %747 = vmatprep.subr.bf16.mxu0 0
        %748 = vmatpush2.bf16.msra.mxu0 0
        %749 = vmatprep.subr.bf16.mxu0 0
        %750 = vmatpush2.bf16.msra.mxu0 0
        %751 = vmatprep.subr.bf16.mxu0 0
        %752 = vmatpush2.bf16.msra.mxu0 0
        %753 = vmatprep.subr.bf16.mxu0 0
        %754 = vmatpush2.bf16.msra.mxu0 0
        %755 = vmatprep.mubr.bf16.mxu0 0
        %756 = vmatmul.mubr.bf16.gmra.mxu0 %v546
        %v757 = vpop.f32.mrf.mxu0
        %v758 = vadd.f32 %v669, %v757
        %v759 = vpop.f32.mrf.mxu0
        %v760 = vpop.f32.mrf.mxu0
        %v761 = vadd.f32 %v672, %v760
        %v762 = vpop.f32.mrf.mxu0
        %763 = vdwg.mxu0
        %764 = vst.msk [vmem:[%s320] sm:$0xff] %vm369, %v758
        %765 = vst.msk [vmem:[%s320 + $0x8] sm:$0xff] %vm369, %v761
        %766 = vmatprep.subr.bf16.mxu0 0
        %767 = vmatpush1.bf16.msra.mxu0 %v625
        %768 = vmatprep.subr.bf16.mxu0 0
        %769 = vmatpush1.bf16.msra.mxu0 %v624
        %770 = vmatprep.subr.bf16.mxu0 0
        %771 = vmatpush1.bf16.msra.mxu0 %v623
        %772 = vmatprep.subr.bf16.mxu0 0
        %773 = vmatpush1.bf16.msra.mxu0 %v622
        %774 = vmatprep.subr.bf16.mxu0 0
        %775 = vmatpush1.bf16.msra.mxu0 %v621
        %776 = vmatprep.subr.bf16.mxu0 0
        %777 = vmatpush1.bf16.msra.mxu0 %v620
        %778 = vmatprep.subr.bf16.mxu0 0
        %779 = vmatpush1.bf16.msra.mxu0 %v619
        %780 = vmatprep.subr.bf16.mxu0 0
        %781 = vmatpush1.bf16.msra.mxu0 %v618
        %782 = vmatprep.subr.bf16.mxu0 0
        %783 = vmatpush2.bf16.msra.mxu0 0
        %784 = vmatprep.subr.bf16.mxu0 0
        %785 = vmatpush2.bf16.msra.mxu0 0
        %786 = vmatprep.subr.bf16.mxu0 0
        %787 = vmatpush2.bf16.msra.mxu0 0
        %788 = vmatprep.subr.bf16.mxu0 0
        %789 = vmatpush2.bf16.msra.mxu0 0
        %790 = vmatprep.subr.bf16.mxu0 0
        %791 = vmatpush2.bf16.msra.mxu0 0
        %792 = vmatprep.subr.bf16.mxu0 0
        %793 = vmatpush2.bf16.msra.mxu0 0
        %794 = vmatprep.subr.bf16.mxu0 0
        %795 = vmatpush2.bf16.msra.mxu0 0
        %796 = vmatprep.subr.bf16.mxu0 0
        %797 = vmatpush2.bf16.msra.mxu0 0
        %798 = vmatprep.mubr.bf16.mxu0 0
        %799 = vmatmul.mubr.bf16.gmra.mxu0 %v553
        %v800 = vpop.f32.mrf.mxu0
        %v801 = vadd.f32 0.0, %v800
        %v802 = vpop.f32.mrf.mxu0
        %v803 = vpop.f32.mrf.mxu0
        %v804 = vadd.f32 0.0, %v803
        %v805 = vpop.f32.mrf.mxu0
        %806 = vdwg.mxu0
        %807 = vmatprep.subr.bf16.mxu0 0
        %808 = vmatpush1.bf16.msra.mxu0 %v714
        %809 = vmatprep.subr.bf16.mxu0 0
        %810 = vmatpush1.bf16.msra.mxu0 %v713
        %811 = vmatprep.subr.bf16.mxu0 0
        %812 = vmatpush1.bf16.msra.mxu0 %v712
        %813 = vmatprep.subr.bf16.mxu0 0
        %814 = vmatpush1.bf16.msra.mxu0 %v711
        %815 = vmatprep.subr.bf16.mxu0 0
        %816 = vmatpush1.bf16.msra.mxu0 %v710
        %817 = vmatprep.subr.bf16.mxu0 0
        %818 = vmatpush1.bf16.msra.mxu0 %v709
        %819 = vmatprep.subr.bf16.mxu0 0
        %820 = vmatpush1.bf16.msra.mxu0 %v708
        %821 = vmatprep.subr.bf16.mxu0 0
        %822 = vmatpush1.bf16.msra.mxu0 %v707
        %823 = vmatprep.subr.bf16.mxu0 0
        %824 = vmatpush2.bf16.msra.mxu0 0
        %825 = vmatprep.subr.bf16.mxu0 0
        %826 = vmatpush2.bf16.msra.mxu0 0
        %827 = vmatprep.subr.bf16.mxu0 0
        %828 = vmatpush2.bf16.msra.mxu0 0
        %829 = vmatprep.subr.bf16.mxu0 0
        %830 = vmatpush2.bf16.msra.mxu0 0
        %831 = vmatprep.subr.bf16.mxu0 0
        %832 = vmatpush2.bf16.msra.mxu0 0
        %833 = vmatprep.subr.bf16.mxu0 0
        %834 = vmatpush2.bf16.msra.mxu0 0
        %835 = vmatprep.subr.bf16.mxu0 0
        %836 = vmatpush2.bf16.msra.mxu0 0
        %837 = vmatprep.subr.bf16.mxu0 0
        %838 = vmatpush2.bf16.msra.mxu0 0
        %839 = vmatprep.mubr.bf16.mxu0 0
        %840 = vmatmul.mubr.bf16.gmra.mxu0 %v547
        %v841 = vpop.f32.mrf.mxu0
        %v842 = vadd.f32 %v801, %v841
        %v843 = vpop.f32.mrf.mxu0
        %v844 = vpop.f32.mrf.mxu0
        %v845 = vadd.f32 %v804, %v844
        %v846 = vpop.f32.mrf.mxu0
        %847 = vdwg.mxu0
        %s848 = scalar_lea.vmem %s320, 16 [#allocation8]
        %849 = vst.msk [vmem:[%s848] sm:$0xff] %vm369, %v842
        %850 = vst.msk [vmem:[%s848 + $0x8] sm:$0xff] %vm369, %v845
        %s851 = sand.u32 %s190, 1
        %s852 = scalar_lea.sflag [#allocation5], %s851
        %s853 = sand.u32 %s190, 1
        %s854 = smul.addr %s853, 32
        %s855 = scalar_lea.vmem [#allocation8], %s854
        // Predicated region
        $region57: #{tpu_custom_call.1} parent=43 // pred_check
          %p856 = pneg %p200
        $region58: #{tpu_custom_call.1} parent=43 // pred_check_branch
          %858 = sbr.rel (%p856) target = $region60
        $region59: #{tpu_custom_call.1} parent=43 // pred_region
          %s859 = smul.u32 2, %s26
          %s860 = smul.u32 2, %s27
          %s862 = ssub.s32 512, 512
          %863 = vsyncadd %s852, %s862
          %s864 = smul.addr %s859, 2
          %s865 = sadd.s32 %s860, %s864
          %s866 = smul.addr %s865, 128
          %s867 = scalar_lea.hbm %s6, %s866
          %s868 = sshll.u32 %s855, 4
          %s869 = int_to_ptr.vmem [resolvable:$true] %s868
          %874 = dma.vmem_to_hbm [thread:$0]  %s869, 512, %s867, %s852, 128, 128, 8
        $region60: #{tpu_custom_call.1} parent=43 // pred_fallthru
          _
      $region44: #{tpu_custom_call.1} parent=5 // pred_fallthru
        _
      %p875 = scmp.le.s32.totalorder 2, %s17
      // Predicated region
      $region61: #{tpu_custom_call.1} parent=5 // pred_check
        %p876 = pneg %p875
      $region62: #{tpu_custom_call.1} parent=5 // pred_check_branch
        %878 = sbr.rel (%p876) target = $region64
      $region63: #{tpu_custom_call.1} parent=5 // pred_region
        %s879 = ssub.s32 %s17, 2
        // Predicated region
        $region65: #{tpu_custom_call.1} parent=63 // pred_check
          %p880 = pneg %p206
        $region66: #{tpu_custom_call.1} parent=63 // pred_check_branch
          %882 = sbr.rel (%p880) target = $region68
        $region67: #{tpu_custom_call.1} parent=63 // pred_region
          %s883 = sand.u32 %s191, 1
          %s884 = scalar_lea.sflag [#allocation5], %s883
          %s885 = sand.u32 %s191, 1
          %s886 = smul.addr %s885, 32
          %s887 = scalar_lea.vmem [#allocation8], %s886
          %888 = dma.done %s884, 512
        $region68: #{tpu_custom_call.1} parent=63 // pred_fallthru
          _
      $region64: #{tpu_custom_call.1} parent=5 // pred_fallthru
        _
    $region6: #{tpu_custom_call.1} parent=1 // loop_footer
      %s21 = sadd.s32 1, %s17
    $region7: #{tpu_custom_call.1} parent=1 // loop_footer_branch
      %16 = sbr.rel target = $region3
    $region8: #{tpu_custom_call.1} parent=1 // loop_exit
      _
    %889 = vsyncpa [#allocation4], 1
    %s890 = scalar_lea.sflag [#allocation4], 1
    %891 = vsyncpa %s890, 1
    %892 = vsyncpa [#allocation7], 1
    %893 = vsyncpa [#allocation5], 1
    %s894 = scalar_lea.sflag [#allocation5], 1
    %895 = vsyncpa %s894, 1

// kernel: tpu_custom_call.1
$region0: #{tpu_custom_call.1}
  #allocation0 [shape = 'u32[]', space=smem, size = 0x4, offset = 0x4, fixed_abs, tag = 'smem constant byte address 0x4 - core index']
  #allocation1 [shape = 'u32[144,128]{1,0:T(1,128)}', space=vmem, size = 0x12000, scoped, tag = 'internal scratch']
  #allocation2 [shape = 'bf16[16,256]{1,0:T(8,128)(2,1)}', space=vmem, size = 0x2000, scoped, tag = 'scratch operand']
  %s0 = inlined_call_operand.vmem [shape: bf16[4,2,16,256], index: 0, kind: input, shape index: {}]
  %s1 = inlined_call_operand.vmem [shape: bf16[16,16], index: 1, kind: input, shape index: {}]
  %s2 = inlined_call_operand.hbm [shape: bf16[16,16], index: 2, kind: input, shape index: {}]
  %s3 = inlined_call_operand.hbm [shape: bf16[16,16], index: 3, kind: input, shape index: {}]
  %s4 = inlined_call_operand.vmem [shape: bf16[128,16], index: 4, kind: input, shape index: {}]
  %s5 = inlined_call_operand.vmem [shape: bf16[128,16], index: 5, kind: input, shape index: {}]
  %s6 = inlined_call_operand.hbm [shape: f32[8,16,16], index: 6, kind: output, shape index: {}]
  %s7 = sld [smem:[#allocation0]]
  $region69: #{tpu_custom_call.1} parent=0
    _
  %s9 = ssub.s32 1, %s7
  %s10 = scalar_select 0, %s9, %s7
  $region1: #{tpu_custom_call.1} parent=0
    #allocation3 [shape = 'u8[4096]{0}', space=vmem, size = 0x1000, scoped, tag = 'input window, operand 2, single buffered']
    #allocation4 [shape = 's32[2]{0}', space=sflag, size = 0x8, scoped, tag = 'scoped memory for tpu_custom_call.1']
    #allocation5 [shape = 's32[2]{0}', space=sflag, size = 0x8, scoped, tag = 'scoped memory for tpu_custom_call.1']
    #allocation6 [shape = 'u8[4096]{0}', space=vmem, size = 0x1000, scoped, tag = 'input window, operand 3, single buffered']
    #allocation7 [shape = 's32[1]{0}', space=sflag, size = 0x4, scoped, tag = 'scoped memory for tpu_custom_call.1']
    #allocation8 [shape = 'u8[32768]{0}', space=vmem, size = 0x8000, scoped, tag = 'output window, operand 0']
    %11 = vsyncpa [#allocation4], 0
    %12 = vsyncpa [#allocation7], 0
    %13 = vsyncpa [#allocation5], 0
    %s14 = scalar_lea.sflag [#allocation5], 1
    %15 = vsyncpa %s14, 0
    loop: start=0, step=1, limit=6
    $region2: #{tpu_custom_call.1} parent=1 // loop_pre_header
      _
    $region3: #{tpu_custom_call.1} parent=1 // loop_header
      %s17 = sphi 0, %s21
      %p18 = scmp.ge.s32.totalorder %s17, 6
      %s24 = sphi 0, %s36
      %s25 = sphi 0, %s32
      %s26 = sphi 0, %s24
      %s27 = sphi 0, %s25
      %s28 = sphi 0, %s26
      %s29 = sphi 0, %s27
      %s39 = sphi 0, %s41
      %s42 = sphi 0, %s39
      %s43 = sphi 0, %s42
      %s59 = sphi 0, %s43
      %s65 = sphi 0, %s67
      %s68 = sphi 0, %s65
      %s69 = sphi 0, %s68
      %s85 = sphi 0, %s69
      %s91 = sphi 0, %s93
      %s94 = sphi 0, %s91
      %s95 = sphi 0, %s94
      %s111 = sphi 0, %s95
      %s117 = sphi 0, %s119
      %s120 = sphi 0, %s117
      %s121 = sphi 0, %s120
      %s137 = sphi 0, %s121
      %s141 = sphi 0, %s141
      %s143 = sphi 0, %s141
      %s144 = sphi 0, %s143
      %s158 = sphi 0, %s144
      %s162 = sphi 0, %s162
      %s164 = sphi 0, %s162
      %s165 = sphi 0, %s164
      %s179 = sphi 0, %s165
      %s187 = sphi 0, %s189
      %s190 = sphi 0, %s187
      %s191 = sphi 0, %s190
      %s207 = sphi 0, %s191
    $region4: #{tpu_custom_call.1} parent=1 // loop_header_branch
      %20 = sbr.rel (%p18) target = $region8
    $region5: #{tpu_custom_call.1} parent=1 // loop_body
      %s22 = ssub.s32 %s17, 1
      %s23 = ssub.s32 %s17, 2
      %s30 = sadd.s32 1, %s25
      %p31 = scmp.ge.s32.totalorder %s30, 1
      %s32 = scalar_select %p31, 0, %s30
      %s33 = sadd.s32 1, %s24
      %s34 = scalar_select %p31, %s33, %s24
      %p35 = scmp.ge.s32.totalorder %s34, 4
      %s36 = scalar_select %p35, 0, %s34
      %s37 = ssub.s32 %s24, %s36
      %p38 = scmp.eq.s32.totalorder %s37, 0
      %s40 = sadd.s32 %s39, 1
      %s41 = scalar_select %p38, %s39, %s40
      %p44 = pneg %p38
      %p45 = scmp.eq.s32.totalorder %s17, 3
      %p46 = por %p44, %p45
      %p47 = scmp.ne.s32.totalorder %s39, %s42
      %p48 = scmp.eq.s32.totalorder %s17, 0
      %p49 = por %p47, %p48
      %p50 = scmp.ne.s32.totalorder %s39, %s42
      %p51 = scmp.eq.s32.totalorder %s22, 3
      %p52 = por %p50, %p51
      %p53 = scmp.ne.s32.totalorder %s42, %s43
      %p54 = scmp.eq.s32.totalorder %s22, 0
      %p55 = por %p53, %p54
      %p56 = scmp.ne.s32.totalorder %s42, %s43
      %p57 = scmp.eq.s32.totalorder %s23, 3
      %p58 = por %p56, %p57
      %p60 = scmp.ne.s32.totalorder %s43, %s59
      %p61 = scmp.eq.s32.totalorder %s23, 0
      %p62 = por %p60, %p61
      %s63 = ssub.s32 %s25, %s32
      %p64 = scmp.eq.s32.totalorder %s63, 0
      %s66 = sadd.s32 %s65, 1
      %s67 = scalar_select %p64, %s65, %s66
      %p70 = pneg %p64
      %p71 = scmp.eq.s32.totalorder %s17, 3
      %p72 = por %p70, %p71
      %p73 = scmp.ne.s32.totalorder %s65, %s68
      %p74 = scmp.eq.s32.totalorder %s17, 0
      %p75 = por %p73, %p74
      %p76 = scmp.ne.s32.totalorder %s65, %s68
      %p77 = scmp.eq.s32.totalorder %s22, 3
      %p78 = por %p76, %p77
      %p79 = scmp.ne.s32.totalorder %s68, %s69
      %p80 = scmp.eq.s32.totalorder %s22, 0
      %p81 = por %p79, %p80
      %p82 = scmp.ne.s32.totalorder %s68, %s69
      %p83 = scmp.eq.s32.totalorder %s23, 3
      %p84 = por %p82, %p83
      %p86 = scmp.ne.s32.totalorder %s69, %s85
      %p87 = scmp.eq.s32.totalorder %s23, 0
      %p88 = por %p86, %p87
      %s89 = ssub.s32 %s25, %s32
      %p90 = scmp.eq.s32.totalorder %s89, 0
      %s92 = sadd.s32 %s91, 1
      %s93 = scalar_select %p90, %s91, %s92
      %p96 = pneg %p90
      %p97 = scmp.eq.s32.totalorder %s17, 3
      %p98 = por %p96, %p97
      %p99 = scmp.ne.s32.totalorder %s91, %s94
      %p100 = scmp.eq.s32.totalorder %s17, 0
      %p101 = por %p99, %p100
      %p102 = scmp.ne.s32.totalorder %s91, %s94
      %p103 = scmp.eq.s32.totalorder %s22, 3
      %p104 = por %p102, %p103
      %p105 = scmp.ne.s32.totalorder %s94, %s95
      %p106 = scmp.eq.s32.totalorder %s22, 0
      %p107 = por %p105, %p106
      %p108 = scmp.ne.s32.totalorder %s94, %s95
      %p109 = scmp.eq.s32.totalorder %s23, 3
      %p110 = por %p108, %p109
      %p112 = scmp.ne.s32.totalorder %s95, %s111
      %p113 = scmp.eq.s32.totalorder %s23, 0
      %p114 = por %p112, %p113
      %s115 = ssub.s32 %s25, %s32
      %p116 = scmp.eq.s32.totalorder %s115, 0
      %s118 = sadd.s32 %s117, 1
      %s119 = scalar_select %p116, %s117, %s118
      %p122 = pneg %p116
      %p123 = scmp.eq.s32.totalorder %s17, 3
      %p124 = por %p122, %p123
      %p125 = scmp.ne.s32.totalorder %s117, %s120
      %p126 = scmp.eq.s32.totalorder %s17, 0
      %p127 = por %p125, %p126
      %p128 = scmp.ne.s32.totalorder %s117, %s120
      %p129 = scmp.eq.s32.totalorder %s22, 3
      %p130 = por %p128, %p129
      %p131 = scmp.ne.s32.totalorder %s120, %s121
      %p132 = scmp.eq.s32.totalorder %s22, 0
      %p133 = por %p131, %p132
      %p134 = scmp.ne.s32.totalorder %s120, %s121
      %p135 = scmp.eq.s32.totalorder %s23, 3
      %p136 = por %p134, %p135
      %p138 = scmp.ne.s32.totalorder %s121, %s137
      %p139 = scmp.eq.s32.totalorder %s23, 0
      %p140 = por %p138, %p139
      %s142 = sadd.s32 %s141, 1
      %p145 = scmp.eq.s32.totalorder %s17, 3
      %p146 = scmp.ne.s32.totalorder %s141, %s143
      %p147 = scmp.eq.s32.totalorder %s17, 0
      %p148 = por %p146, %p147
      %p149 = scmp.ne.s32.totalorder %s141, %s143
      %p150 = scmp.eq.s32.totalorder %s22, 3
      %p151 = por %p149, %p150
      %p152 = scmp.ne.s32.totalorder %s143, %s144
      %p153 = scmp.eq.s32.totalorder %s22, 0
      %p154 = por %p152, %p153
      %p155 = scmp.ne.s32.totalorder %s143, %s144
      %p156 = scmp.eq.s32.totalorder %s23, 3
      %p157 = por %p155, %p156
      %p159 = scmp.ne.s32.totalorder %s144, %s158
      %p160 = scmp.eq.s32.totalorder %s23, 0
      %p161 = por %p159, %p160
      %s163 = sadd.s32 %s162, 1
      %p166 = scmp.eq.s32.totalorder %s17, 3
      %p167 = scmp.ne.s32.totalorder %s162, %s164
      %p168 = scmp.eq.s32.totalorder %s17, 0
      %p169 = por %p167, %p168
      %p170 = scmp.ne.s32.totalorder %s162, %s164
      %p171 = scmp.eq.s32.totalorder %s22, 3
      %p172 = por %p170, %p171
      %p173 = scmp.ne.s32.totalorder %s164, %s165
      %p174 = scmp.eq.s32.totalorder %s22, 0
      %p175 = por %p173, %p174
      %p176 = scmp.ne.s32.totalorder %s164, %s165
      %p177 = scmp.eq.s32.totalorder %s23, 3
      %p178 = por %p176, %p177
      %p180 = scmp.ne.s32.totalorder %s165, %s179
      %p181 = scmp.eq.s32.totalorder %s23, 0
      %p182 = por %p180, %p181
      %s183 = ssub.s32 %s24, %s36
      %s184 = ssub.s32 %s25, %s32
      %s185 = sor.u32 %s183, %s184
      %p186 = scmp.eq.s32.totalorder %s185, 0
      %s188 = sadd.s32 %s187, 1
      %s189 = scalar_select %p186, %s187, %s188
      %p192 = pneg %p186
      %p193 = scmp.eq.s32.totalorder %s17, 3
      %p194 = por %p192, %p193
      %p195 = scmp.ne.s32.totalorder %s187, %s190
      %p196 = scmp.eq.s32.totalorder %s17, 0
      %p197 = por %p195, %p196
      %p198 = scmp.ne.s32.totalorder %s187, %s190
      %p199 = scmp.eq.s32.totalorder %s22, 3
      %p200 = por %p198, %p199
      %p201 = scmp.ne.s32.totalorder %s190, %s191
      %p202 = scmp.eq.s32.totalorder %s22, 0
      %p203 = por %p201, %p202
      %p204 = scmp.ne.s32.totalorder %s190, %s191
      %p205 = scmp.eq.s32.totalorder %s23, 3
      %p206 = por %p204, %p205
      %p208 = scmp.ne.s32.totalorder %s191, %s207
      %p209 = scmp.eq.s32.totalorder %s23, 0
      %p210 = por %p208, %p209
      %p211 = scmp.le.s32.totalorder 1, %s17
      %p212 = scmp.lt.s32.totalorder %s17, 5
      %p213 = pnand %p211, %p212
      %p214 = pneg %p213
      // Predicated region
      $region9: #{tpu_custom_call.1} parent=5 // pred_check
        _
      $region10: #{tpu_custom_call.1} parent=5 // pred_check_branch
        %216 = sbr.rel (%p213) target = $region12
      $region11: #{tpu_custom_call.1} parent=5 // pred_region
        %s217 = ssub.s32 %s17, 1
        // Predicated region
        $region13: #{tpu_custom_call.1} parent=11 // pred_check
          %p218 = pneg %p81
        $region14: #{tpu_custom_call.1} parent=11 // pred_check_branch
          %220 = sbr.rel (%p218) target = $region16
        $region15: #{tpu_custom_call.1} parent=11 // pred_region
          %s221 = smul.u32 2, %s27
          %p222 = scmp.lt.s32.totalorder %s221, 1
          %s223 = scalar_select %p222, %s221, 1
          %s224 = smul.addr %s223, 4
          %s225 = scalar_lea.vmem %s1, %s224
          %s226 = smul.u32 2, %s27
        $region16: #{tpu_custom_call.1} parent=11 // pred_fallthru
          _
        // Predicated region
        $region17: #{tpu_custom_call.1} parent=11 // pred_check
          %p227 = pneg %p107
        $region18: #{tpu_custom_call.1} parent=11 // pred_check_branch
          %229 = sbr.rel (%p227) target = $region20
        $region19: #{tpu_custom_call.1} parent=11 // pred_region
          %s230 = smul.u32 2, %s27
          %s232 = ssub.s32 128, 128
          %233 = vsyncadd [#allocation4], %s232
          %s234 = smul.addr %s230, 64
          %s235 = scalar_lea.hbm %s2, %s234
          %s236 = sshll.u32 [#allocation3], 4
          %s237 = int_to_ptr.vmem [resolvable:$true] %s236
          %242 = dma.hbm_to_vmem [thread:$0]  %s235, 128, %s237, [#allocation4], 64, 64, 4
        $region20: #{tpu_custom_call.1} parent=11 // pred_fallthru
          _
        // Predicated region
        $region21: #{tpu_custom_call.1} parent=11 // pred_check
          %p243 = pneg %p133
        $region22: #{tpu_custom_call.1} parent=11 // pred_check_branch
          %245 = sbr.rel (%p243) target = $region24
        $region23: #{tpu_custom_call.1} parent=11 // pred_region
          %s246 = smul.u32 2, %s27
          %s248 = ssub.s32 128, 128
          %249 = vsyncadd [#allocation7], %s248
          %s250 = smul.addr %s246, 64
          %s251 = scalar_lea.hbm %s3, %s250
          %s252 = sshll.u32 [#allocation6], 4
          %s253 = int_to_ptr.vmem [resolvable:$true] %s252
          %258 = dma.hbm_to_vmem [thread:$0]  %s251, 128, %s253, [#allocation7], 64, 64, 4
        $region24: #{tpu_custom_call.1} parent=11 // pred_fallthru
          _
        // Predicated region
        $region25: #{tpu_custom_call.1} parent=11 // pred_check
          %p259 = pneg %p154
        $region26: #{tpu_custom_call.1} parent=11 // pred_check_branch
          %261 = sbr.rel (%p259) target = $region28
        $region27: #{tpu_custom_call.1} parent=11 // pred_region
          _
        $region28: #{tpu_custom_call.1} parent=11 // pred_fallthru
          _
        // Predicated region
        $region29: #{tpu_custom_call.1} parent=11 // pred_check
          %p262 = pneg %p175
        $region30: #{tpu_custom_call.1} parent=11 // pred_check_branch
          %264 = sbr.rel (%p262) target = $region32
        $region31: #{tpu_custom_call.1} parent=11 // pred_region
          _
        $region32: #{tpu_custom_call.1} parent=11 // pred_fallthru
          _
      $region12: #{tpu_custom_call.1} parent=5 // pred_fallthru
        _
      %p265 = scmp.lt.s32.totalorder %s17, 4
      // Predicated region
      $region33: #{tpu_custom_call.1} parent=5 // pred_check
        %p266 = pneg %p265
      $region34: #{tpu_custom_call.1} parent=5 // pred_check_branch
        %268 = sbr.rel (%p266) target = $region36
      $region35: #{tpu_custom_call.1} parent=5 // pred_region
        // Predicated region
        $region37: #{tpu_custom_call.1} parent=35 // pred_check
          %p269 = pneg %p49
        $region38: #{tpu_custom_call.1} parent=35 // pred_check_branch
          %271 = sbr.rel (%p269) target = $region40
        $region39: #{tpu_custom_call.1} parent=35 // pred_region
          %p272 = scmp.lt.s32.totalorder %s24, 3
          %s273 = scalar_select %p272, %s24, 3
          %s274 = smul.addr %s273, 8
          %s275 = smul.addr %s274, 4
          %s276 = scalar_lea.vmem %s0, %s275
        $region40: #{tpu_custom_call.1} parent=35 // pred_fallthru
          _
      $region36: #{tpu_custom_call.1} parent=5 // pred_fallthru
        _
      %p277 = scmp.le.s32.totalorder 1, %s17
      %p278 = scmp.lt.s32.totalorder %s17, 5
      %p279 = pnand %p277, %p278
      %p280 = pneg %p279
      // Predicated region
      $region41: #{tpu_custom_call.1} parent=5 // pred_check
        _
      $region42: #{tpu_custom_call.1} parent=5 // pred_check_branch
        %282 = sbr.rel (%p279) target = $region44
      $region43: #{tpu_custom_call.1} parent=5 // pred_region
        %s283 = ssub.s32 %s17, 1
        // Predicated region
        $region45: #{tpu_custom_call.1} parent=43 // pred_check
          %p284 = pneg %p107
        $region46: #{tpu_custom_call.1} parent=43 // pred_check_branch
          %286 = sbr.rel (%p284) target = $region48
        $region47: #{tpu_custom_call.1} parent=43 // pred_region
          %287 = dma.done [#allocation4], 128
        $region48: #{tpu_custom_call.1} parent=43 // pred_fallthru
          _
        // Predicated region
        $region49: #{tpu_custom_call.1} parent=43 // pred_check
          %p288 = pneg %p133
        $region50: #{tpu_custom_call.1} parent=43 // pred_check_branch
          %290 = sbr.rel (%p288) target = $region52
        $region51: #{tpu_custom_call.1} parent=43 // pred_region
          %291 = dma.done [#allocation7], 128
        $region52: #{tpu_custom_call.1} parent=43 // pred_fallthru
          _
        %p292 = scmp.lt.s32.totalorder %s26, 3
        %s293 = scalar_select %p292, %s26, 3
        %s294 = smul.addr %s293, 8
        %s295 = smul.addr %s294, 4
        %s296 = scalar_lea.vmem %s0, %s295
        %p297 = pneg %p55
        %p298 = pneg %p52
        %s299 = smul.u32 2, %s27
        %p300 = scmp.lt.s32.totalorder %s299, 1
        %s301 = scalar_select %p300, %s299, 1
        %s302 = smul.addr %s301, 4
        %s303 = scalar_lea.vmem %s1, %s302
        %p304 = pneg %p81
        %p305 = pneg %p78
        %p306 = pneg %p107
        %p307 = pneg %p104
        %p308 = pneg %p133
        %p309 = pneg %p130
        %p310 = pneg %p154
        %p311 = pneg %p151
        %p312 = pneg %p175
        %p313 = pneg %p172
        %p314 = pneg %p203
        %p315 = pneg %p200
        %s316 = sand.u32 %s190, 1
        %s317 = scalar_lea.sflag [#allocation5], %s316
        %s318 = sand.u32 %s190, 1
        %s319 = smul.addr %s318, 32
        %s320 = scalar_lea.vmem [#allocation8], %s319
        %p321 = scmp.lt.s32.totalorder %s26, 3
        %s322 = scalar_select %p321, %s26, 3
        %s323 = smul.addr %s322, 8
        %s324 = smul.addr %s323, 4
        %s325 = scalar_lea.vmem %s0, %s324
        %s326 = smul.u32 2, %s27
        %p327 = scmp.lt.s32.totalorder %s326, 1
        %s328 = scalar_select %p327, %s326, 1
        %s329 = smul.addr %s328, 4
        %s330 = scalar_lea.vmem %s1, %s329
        %s331 = smul.u32 2, %s27
        %s332 = smul.u32 2, %s27
        %s333 = smul.u32 2, %s27
        %s334 = smul.u32 2, %s26
        %s335 = smul.u32 2, %s27
        %v337 = vld [vmem:[%s325] sm:$0xff]
        %v338 = vld [vmem:[%s325 + $0x8] sm:$0xff]
        %s339 = scalar_lea.vmem %s325, 16
        %v340 = vld [vmem:[%s339] sm:$0xff]
        %v341 = vld [vmem:[%s339 + $0x8] sm:$0xff]
        %p342 = scmp.eq.s32.totalorder %s27, 0
        // Predicated region
        $region53: #{tpu_custom_call.1} parent=43 // pred_check
          %p343 = pneg %p342
        $region54: #{tpu_custom_call.1} parent=43 // pred_check_branch
          %345 = sbr.rel (%p343) target = $region56
        $region55: #{tpu_custom_call.1} parent=43 // pred_region
          %v346 = vadd.bf16 %v337, %v340
          %v347 = vadd.bf16 %v338, %v341
          %348 = vst [vmem:[#allocation2] sm:$0xff] %v346
          %349 = vst [vmem:[#allocation2 + $0x8] sm:$0xff] %v347
        $region56: #{tpu_custom_call.1} parent=43 // pred_fallthru
          _
        %v350 = vld [vmem:[%s330] sm:$0xf]
        %v351 = vld [vmem:[%s330 + $0x4] sm:$0xf]
        %v352 = vld [vmem:[#allocation2] sm:$0xff]
        %v353 = vld [vmem:[#allocation2 + $0x8] sm:$0xff]
        %v356 = vunpack.c.l.b16 %v350
        %v357 = vunpack.c.l.b16 %v351
        %v358 = vpack.c.b16 %v357, %v356
        %v361 = vunpack.c.l.b16 %v352
        %v362 = vunpack.c.h.b16 %v352
        %v363 = vunpack.c.l.b16 %v353
        %v364 = vunpack.c.h.b16 %v353
        %v365 = vpack.c.b16 %v363, %v361
        %v366 = vpack.c.b16 %v364, %v362
        %vm369 = vcmask 130048
        %v371 = vsel %vm369, %v358, 0
        %373 = vmatprep.subr.bf16.mxu0 0
        %374 = vmatpush1.bf16.msra.mxu0 0
        %375 = vmatprep.subr.bf16.mxu0 0
        %376 = vmatpush1.bf16.msra.mxu0 0
        %377 = vmatprep.subr.bf16.mxu0 0
        %378 = vmatpush1.bf16.msra.mxu0 0
        %379 = vmatprep.subr.bf16.mxu0 0
        %380 = vmatpush1.bf16.msra.mxu0 0
        %381 = vmatprep.subr.bf16.mxu0 0
        %382 = vmatpush1.bf16.msra.mxu0 0
        %383 = vmatprep.subr.bf16.mxu0 0
        %384 = vmatpush1.bf16.msra.mxu0 0
        %385 = vmatprep.subr.bf16.mxu0 0
        %386 = vmatpush1.bf16.msra.mxu0 0
        %387 = vmatprep.subr.bf16.mxu0 %v366
        %388 = vmatpush1.bf16.msra.mxu0 %v365
        %389 = vmatprep.subr.bf16.mxu0 0
        %390 = vmatpush2.bf16.msra.mxu0 0
        %391 = vmatprep.subr.bf16.mxu0 0
        %392 = vmatpush2.bf16.msra.mxu0 0
        %393 = vmatprep.subr.bf16.mxu0 0
        %394 = vmatpush2.bf16.msra.mxu0 0
        %395 = vmatprep.subr.bf16.mxu0 0
        %396 = vmatpush2.bf16.msra.mxu0 0
        %397 = vmatprep.subr.bf16.mxu0 0
        %398 = vmatpush2.bf16.msra.mxu0 0
        %399 = vmatprep.subr.bf16.mxu0 0
        %400 = vmatpush2.bf16.msra.mxu0 0
        %401 = vmatprep.subr.bf16.mxu0 0
        %402 = vmatpush2.bf16.msra.mxu0 0
        %403 = vmatprep.subr.bf16.mxu0 0
        %404 = vmatpush2.bf16.msra.mxu0 0
        %405 = vmatprep.mubr.bf16.mxu0 0
        %406 = vmatmul.mubr.bf16.gmra.mxu0 %v371
        %v407 = vpop.f32.mrf.mxu0
        %v408 = vadd.f32 0.0, %v407
        %v409 = vpop.f32.mrf.mxu0
        %v410 = vadd.f32 0.0, %v409
        %v411 = vpop.f32.mrf.mxu0
        %v412 = vadd.f32 0.0, %v411
        %v413 = vpop.f32.mrf.mxu0
        %v414 = vadd.f32 0.0, %v413
        %415 = vdwg.mxu0
        %v416 = vld [vmem:[#allocation3] sm:$0xf]
        %v417 = vld [vmem:[#allocation3 + $0x4] sm:$0xf]
        %v420 = vunpack.c.l.b16 %v416
        %v421 = vunpack.c.l.b16 %v417
        %v422 = vpack.c.b16 %v421, %v420
        %v425 = vunpack.c.l.b16 %v340
        %v426 = vunpack.c.h.b16 %v340
        %v427 = vunpack.c.l.b16 %v341
        %v428 = vunpack.c.h.b16 %v341
        %v429 = vpack.c.b16 %v427, %v425
        %v430 = vpack.c.b16 %v428, %v426
        %v434 = vsel %vm369, %v422, 0
        %436 = vmatprep.subr.bf16.mxu0 0
        %437 = vmatpush1.bf16.msra.mxu0 0
        %438 = vmatprep.subr.bf16.mxu0 0
        %439 = vmatpush1.bf16.msra.mxu0 0
        %440 = vmatprep.subr.bf16.mxu0 0
        %441 = vmatpush1.bf16.msra.mxu0 0
        %442 = vmatprep.subr.bf16.mxu0 0
        %443 = vmatpush1.bf16.msra.mxu0 0
        %444 = vmatprep.subr.bf16.mxu0 0
        %445 = vmatpush1.bf16.msra.mxu0 0
        %446 = vmatprep.subr.bf16.mxu0 0
        %447 = vmatpush1.bf16.msra.mxu0 0
        %448 = vmatprep.subr.bf16.mxu0 0
        %449 = vmatpush1.bf16.msra.mxu0 0
        %450 = vmatprep.subr.bf16.mxu0 %v430
        %451 = vmatpush1.bf16.msra.mxu0 %v429
        %452 = vmatprep.subr.bf16.mxu0 0
        %453 = vmatpush2.bf16.msra.mxu0 0
        %454 = vmatprep.subr.bf16.mxu0 0
        %455 = vmatpush2.bf16.msra.mxu0 0
        %456 = vmatprep.subr.bf16.mxu0 0
        %457 = vmatpush2.bf16.msra.mxu0 0
        %458 = vmatprep.subr.bf16.mxu0 0
        %459 = vmatpush2.bf16.msra.mxu0 0
        %460 = vmatprep.subr.bf16.mxu0 0
        %461 = vmatpush2.bf16.msra.mxu0 0
        %462 = vmatprep.subr.bf16.mxu0 0
        %463 = vmatpush2.bf16.msra.mxu0 0
        %464 = vmatprep.subr.bf16.mxu0 0
        %465 = vmatpush2.bf16.msra.mxu0 0
        %466 = vmatprep.subr.bf16.mxu0 0
        %467 = vmatpush2.bf16.msra.mxu0 0
        %468 = vmatprep.mubr.bf16.mxu0 0
        %469 = vmatmul.mubr.bf16.gmra.mxu0 %v434
        %v470 = vpop.f32.mrf.mxu0
        %v471 = vadd.f32 0.0, %v470
        %v472 = vpop.f32.mrf.mxu0
        %v473 = vadd.f32 0.0, %v472
        %v474 = vpop.f32.mrf.mxu0
        %v475 = vadd.f32 0.0, %v474
        %v476 = vpop.f32.mrf.mxu0
        %v477 = vadd.f32 0.0, %v476
        %478 = vdwg.mxu0
        %v479 = vld [vmem:[#allocation6] sm:$0xf]
        %v480 = vld [vmem:[#allocation6 + $0x4] sm:$0xf]
        %v483 = vunpack.c.l.b16 %v479
        %v484 = vunpack.c.l.b16 %v480
        %v485 = vpack.c.b16 %v484, %v483
        %v488 = vunpack.c.l.b16 %v337
        %v489 = vunpack.c.h.b16 %v337
        %v490 = vunpack.c.l.b16 %v338
        %v491 = vunpack.c.h.b16 %v338
        %v492 = vpack.c.b16 %v490, %v488
        %v493 = vpack.c.b16 %v491, %v489
        %v497 = vsel %vm369, %v485, 0
        %499 = vmatprep.subr.bf16.mxu0 0
        %500 = vmatpush1.bf16.msra.mxu0 0
        %501 = vmatprep.subr.bf16.mxu0 0
        %502 = vmatpush1.bf16.msra.mxu0 0
        %503 = vmatprep.subr.bf16.mxu0 0
        %504 = vmatpush1.bf16.msra.mxu0 0
        %505 = vmatprep.subr.bf16.mxu0 0
        %506 = vmatpush1.bf16.msra.mxu0 0
        %507 = vmatprep.subr.bf16.mxu0 0
        %508 = vmatpush1.bf16.msra.mxu0 0
        %509 = vmatprep.subr.bf16.mxu0 0
        %510 = vmatpush1.bf16.msra.mxu0 0
        %511 = vmatprep.subr.bf16.mxu0 0
        %512 = vmatpush1.bf16.msra.mxu0 0
        %513 = vmatprep.subr.bf16.mxu0 %v493
        %514 = vmatpush1.bf16.msra.mxu0 %v492
        %515 = vmatprep.subr.bf16.mxu0 0
        %516 = vmatpush2.bf16.msra.mxu0 0
        %517 = vmatprep.subr.bf16.mxu0 0
        %518 = vmatpush2.bf16.msra.mxu0 0
        %519 = vmatprep.subr.bf16.mxu0 0
        %520 = vmatpush2.bf16.msra.mxu0 0
        %521 = vmatprep.subr.bf16.mxu0 0
        %522 = vmatpush2.bf16.msra.mxu0 0
        %523 = vmatprep.subr.bf16.mxu0 0
        %524 = vmatpush2.bf16.msra.mxu0 0
        %525 = vmatprep.subr.bf16.mxu0 0
        %526 = vmatpush2.bf16.msra.mxu0 0
        %527 = vmatprep.subr.bf16.mxu0 0
        %528 = vmatpush2.bf16.msra.mxu0 0
        %529 = vmatprep.subr.bf16.mxu0 0
        %530 = vmatpush2.bf16.msra.mxu0 0
        %531 = vmatprep.mubr.bf16.mxu0 0
        %532 = vmatmul.mubr.bf16.gmra.mxu0 %v497
        %v533 = vpop.f32.mrf.mxu0
        %v534 = vadd.f32 0.0, %v533
        %v535 = vpop.f32.mrf.mxu0
        %v536 = vadd.f32 0.0, %v535
        %v537 = vpop.f32.mrf.mxu0
        %v538 = vadd.f32 0.0, %v537
        %v539 = vpop.f32.mrf.mxu0
        %v540 = vadd.f32 0.0, %v539
        %541 = vdwg.mxu0
        %v542 = vsub.f32 %v408, %v471
        %v543 = vsub.f32 %v410, %v473
        %v544 = vsub.f32 %v412, %v475
        %v545 = vsub.f32 %v414, %v477
        %v546 = vpack.c.bf16 %v544, %v542
        %v547 = vpack.c.bf16 %v545, %v543
        %v548 = vsub.f32 %v408, %v534
        %v549 = vsub.f32 %v410, %v536
        %v550 = vsub.f32 %v412, %v538
        %v551 = vsub.f32 %v414, %v540
        %v552 = vpack.c.bf16 %v550, %v548
        %v553 = vpack.c.bf16 %v551, %v549
        %v554 = vld [vmem:[%s4] sm:$0xf]
        %v555 = vld [vmem:[%s4 + $0x4] sm:$0xf]
        %v556 = vld [vmem:[%s4 + $0x8] sm:$0xf]
        %v557 = vld [vmem:[%s4 + $0xc] sm:$0xf]
        %v558 = vld [vmem:[%s4 + $0x10] sm:$0xf]
        %v559 = vld [vmem:[%s4 + $0x14] sm:$0xf]
        %v560 = vld [vmem:[%s4 + $0x18] sm:$0xf]
        %v561 = vld [vmem:[%s4 + $0x1c] sm:$0xf]
        %v562 = vld [vmem:[%s4 + $0x20] sm:$0xf]
        %v563 = vld [vmem:[%s4 + $0x24] sm:$0xf]
        %v564 = vld [vmem:[%s4 + $0x28] sm:$0xf]
        %v565 = vld [vmem:[%s4 + $0x2c] sm:$0xf]
        %v566 = vld [vmem:[%s4 + $0x30] sm:$0xf]
        %v567 = vld [vmem:[%s4 + $0x34] sm:$0xf]
        %v568 = vld [vmem:[%s4 + $0x38] sm:$0xf]
        %v569 = vld [vmem:[%s4 + $0x3c] sm:$0xf]
        %v570 = vld [vmem:[%s5] sm:$0xf]
        %v571 = vld [vmem:[%s5 + $0x4] sm:$0xf]
        %v572 = vld [vmem:[%s5 + $0x8] sm:$0xf]
        %v573 = vld [vmem:[%s5 + $0xc] sm:$0xf]
        %v574 = vld [vmem:[%s5 + $0x10] sm:$0xf]
        %v575 = vld [vmem:[%s5 + $0x14] sm:$0xf]
        %v576 = vld [vmem:[%s5 + $0x18] sm:$0xf]
        %v577 = vld [vmem:[%s5 + $0x1c] sm:$0xf]
        %v578 = vld [vmem:[%s5 + $0x20] sm:$0xf]
        %v579 = vld [vmem:[%s5 + $0x24] sm:$0xf]
        %v580 = vld [vmem:[%s5 + $0x28] sm:$0xf]
        %v581 = vld [vmem:[%s5 + $0x2c] sm:$0xf]
        %v582 = vld [vmem:[%s5 + $0x30] sm:$0xf]
        %v583 = vld [vmem:[%s5 + $0x34] sm:$0xf]
        %v584 = vld [vmem:[%s5 + $0x38] sm:$0xf]
        %v585 = vld [vmem:[%s5 + $0x3c] sm:$0xf]
        %v602 = vunpack.c.l.b16 %v570
        %v603 = vunpack.c.l.b16 %v571
        %v604 = vunpack.c.l.b16 %v572
        %v605 = vunpack.c.l.b16 %v573
        %v606 = vunpack.c.l.b16 %v574
        %v607 = vunpack.c.l.b16 %v575
        %v608 = vunpack.c.l.b16 %v576
        %v609 = vunpack.c.l.b16 %v577
        %v610 = vunpack.c.l.b16 %v578
        %v611 = vunpack.c.l.b16 %v579
        %v612 = vunpack.c.l.b16 %v580
        %v613 = vunpack.c.l.b16 %v581
        %v614 = vunpack.c.l.b16 %v582
        %v615 = vunpack.c.l.b16 %v583
        %v616 = vunpack.c.l.b16 %v584
        %v617 = vunpack.c.l.b16 %v585
        %v618 = vpack.c.b16 %v603, %v602
        %v619 = vpack.c.b16 %v605, %v604
        %v620 = vpack.c.b16 %v607, %v606
        %v621 = vpack.c.b16 %v609, %v608
        %v622 = vpack.c.b16 %v611, %v610
        %v623 = vpack.c.b16 %v613, %v612
        %v624 = vpack.c.b16 %v615, %v614
        %v625 = vpack.c.b16 %v617, %v616
        %634 = vmatprep.subr.bf16.mxu0 0
        %635 = vmatpush1.bf16.msra.mxu0 %v625
        %636 = vmatprep.subr.bf16.mxu0 0
        %637 = vmatpush1.bf16.msra.mxu0 %v624
        %638 = vmatprep.subr.bf16.mxu0 0
        %639 = vmatpush1.bf16.msra.mxu0 %v623
        %640 = vmatprep.subr.bf16.mxu0 0
        %641 = vmatpush1.bf16.msra.mxu0 %v622
        %642 = vmatprep.subr.bf16.mxu0 0
        %643 = vmatpush1.bf16.msra.mxu0 %v621
        %644 = vmatprep.subr.bf16.mxu0 0
        %645 = vmatpush1.bf16.msra.mxu0 %v620
        %646 = vmatprep.subr.bf16.mxu0 0
        %647 = vmatpush1.bf16.msra.mxu0 %v619
        %648 = vmatprep.subr.bf16.mxu0 0
        %649 = vmatpush1.bf16.msra.mxu0 %v618
        %650 = vmatprep.subr.bf16.mxu0 0
        %651 = vmatpush2.bf16.msra.mxu0 0
        %652 = vmatprep.subr.bf16.mxu0 0
        %653 = vmatpush2.bf16.msra.mxu0 0
        %654 = vmatprep.subr.bf16.mxu0 0
        %655 = vmatpush2.bf16.msra.mxu0 0
        %656 = vmatprep.subr.bf16.mxu0 0
        %657 = vmatpush2.bf16.msra.mxu0 0
        %658 = vmatprep.subr.bf16.mxu0 0
        %659 = vmatpush2.bf16.msra.mxu0 0
        %660 = vmatprep.subr.bf16.mxu0 0
        %661 = vmatpush2.bf16.msra.mxu0 0
        %662 = vmatprep.subr.bf16.mxu0 0
        %663 = vmatpush2.bf16.msra.mxu0 0
        %664 = vmatprep.subr.bf16.mxu0 0
        %665 = vmatpush2.bf16.msra.mxu0 0
        %666 = vmatprep.mubr.bf16.mxu0 0
        %667 = vmatmul.mubr.bf16.gmra.mxu0 %v552
        %v668 = vpop.f32.mrf.mxu0
        %v669 = vadd.f32 0.0, %v668
        %v670 = vpop.f32.mrf.mxu0
        %v671 = vpop.f32.mrf.mxu0
        %v672 = vadd.f32 0.0, %v671
        %v673 = vpop.f32.mrf.mxu0
        %674 = vdwg.mxu0
        %v691 = vunpack.c.l.b16 %v554
        %v692 = vunpack.c.l.b16 %v555
        %v693 = vunpack.c.l.b16 %v556
        %v694 = vunpack.c.l.b16 %v557
        %v695 = vunpack.c.l.b16 %v558
        %v696 = vunpack.c.l.b16 %v559
        %v697 = vunpack.c.l.b16 %v560
        %v698 = vunpack.c.l.b16 %v561
        %v699 = vunpack.c.l.b16 %v562
        %v700 = vunpack.c.l.b16 %v563
        %v701 = vunpack.c.l.b16 %v564
        %v702 = vunpack.c.l.b16 %v565
        %v703 = vunpack.c.l.b16 %v566
        %v704 = vunpack.c.l.b16 %v567
        %v705 = vunpack.c.l.b16 %v568
        %v706 = vunpack.c.l.b16 %v569
        %v707 = vpack.c.b16 %v692, %v691
        %v708 = vpack.c.b16 %v694, %v693
        %v709 = vpack.c.b16 %v696, %v695
        %v710 = vpack.c.b16 %v698, %v697
        %v711 = vpack.c.b16 %v700, %v699
        %v712 = vpack.c.b16 %v702, %v701
        %v713 = vpack.c.b16 %v704, %v703
        %v714 = vpack.c.b16 %v706, %v705
        %723 = vmatprep.subr.bf16.mxu0 0
        %724 = vmatpush1.bf16.msra.mxu0 %v714
        %725 = vmatprep.subr.bf16.mxu0 0
        %726 = vmatpush1.bf16.msra.mxu0 %v713
        %727 = vmatprep.subr.bf16.mxu0 0
        %728 = vmatpush1.bf16.msra.mxu0 %v712
        %729 = vmatprep.subr.bf16.mxu0 0
        %730 = vmatpush1.bf16.msra.mxu0 %v711
        %731 = vmatprep.subr.bf16.mxu0 0
        %732 = vmatpush1.bf16.msra.mxu0 %v710
        %733 = vmatprep.subr.bf16.mxu0 0
        %734 = vmatpush1.bf16.msra.mxu0 %v709
        %735 = vmatprep.subr.bf16.mxu0 0
        %736 = vmatpush1.bf16.msra.mxu0 %v708
        %737 = vmatprep.subr.bf16.mxu0 0
        %738 = vmatpush1.bf16.msra.mxu0 %v707
        %739 = vmatprep.subr.bf16.mxu0 0
        %740 = vmatpush2.bf16.msra.mxu0 0
        %741 = vmatprep.subr.bf16.mxu0 0
        %742 = vmatpush2.bf16.msra.mxu0 0
        %743 = vmatprep.subr.bf16.mxu0 0
        %744 = vmatpush2.bf16.msra.mxu0 0
        %745 = vmatprep.subr.bf16.mxu0 0
        %746 = vmatpush2.bf16.msra.mxu0 0
        %747 = vmatprep.subr.bf16.mxu0 0
        %748 = vmatpush2.bf16.msra.mxu0 0
        %749 = vmatprep.subr.bf16.mxu0 0
        %750 = vmatpush2.bf16.msra.mxu0 0
        %751 = vmatprep.subr.bf16.mxu0 0
        %752 = vmatpush2.bf16.msra.mxu0 0
        %753 = vmatprep.subr.bf16.mxu0 0
        %754 = vmatpush2.bf16.msra.mxu0 0
        %755 = vmatprep.mubr.bf16.mxu0 0
        %756 = vmatmul.mubr.bf16.gmra.mxu0 %v546
        %v757 = vpop.f32.mrf.mxu0
        %v758 = vadd.f32 %v669, %v757
        %v759 = vpop.f32.mrf.mxu0
        %v760 = vpop.f32.mrf.mxu0
        %v761 = vadd.f32 %v672, %v760
        %v762 = vpop.f32.mrf.mxu0
        %763 = vdwg.mxu0
        %764 = vst.msk [vmem:[%s320] sm:$0xff] %vm369, %v758
        %765 = vst.msk [vmem:[%s320 + $0x8] sm:$0xff] %vm369, %v761
        %766 = vmatprep.subr.bf16.mxu0 0
        %767 = vmatpush1.bf16.msra.mxu0 %v625
        %768 = vmatprep.subr.bf16.mxu0 0
        %769 = vmatpush1.bf16.msra.mxu0 %v624
        %770 = vmatprep.subr.bf16.mxu0 0
        %771 = vmatpush1.bf16.msra.mxu0 %v623
        %772 = vmatprep.subr.bf16.mxu0 0
        %773 = vmatpush1.bf16.msra.mxu0 %v622
        %774 = vmatprep.subr.bf16.mxu0 0
        %775 = vmatpush1.bf16.msra.mxu0 %v621
        %776 = vmatprep.subr.bf16.mxu0 0
        %777 = vmatpush1.bf16.msra.mxu0 %v620
        %778 = vmatprep.subr.bf16.mxu0 0
        %779 = vmatpush1.bf16.msra.mxu0 %v619
        %780 = vmatprep.subr.bf16.mxu0 0
        %781 = vmatpush1.bf16.msra.mxu0 %v618
        %782 = vmatprep.subr.bf16.mxu0 0
        %783 = vmatpush2.bf16.msra.mxu0 0
        %784 = vmatprep.subr.bf16.mxu0 0
        %785 = vmatpush2.bf16.msra.mxu0 0
        %786 = vmatprep.subr.bf16.mxu0 0
        %787 = vmatpush2.bf16.msra.mxu0 0
        %788 = vmatprep.subr.bf16.mxu0 0
        %789 = vmatpush2.bf16.msra.mxu0 0
        %790 = vmatprep.subr.bf16.mxu0 0
        %791 = vmatpush2.bf16.msra.mxu0 0
        %792 = vmatprep.subr.bf16.mxu0 0
        %793 = vmatpush2.bf16.msra.mxu0 0
        %794 = vmatprep.subr.bf16.mxu0 0
        %795 = vmatpush2.bf16.msra.mxu0 0
        %796 = vmatprep.subr.bf16.mxu0 0
        %797 = vmatpush2.bf16.msra.mxu0 0
        %798 = vmatprep.mubr.bf16.mxu0 0
        %799 = vmatmul.mubr.bf16.gmra.mxu0 %v553
        %v800 = vpop.f32.mrf.mxu0
        %v801 = vadd.f32 0.0, %v800
        %v802 = vpop.f32.mrf.mxu0
        %v803 = vpop.f32.mrf.mxu0
        %v804 = vadd.f32 0.0, %v803
        %v805 = vpop.f32.mrf.mxu0
        %806 = vdwg.mxu0
        %807 = vmatprep.subr.bf16.mxu0 0
        %808 = vmatpush1.bf16.msra.mxu0 %v714
        %809 = vmatprep.subr.bf16.mxu0 0
        %810 = vmatpush1.bf16.msra.mxu0 %v713
        %811 = vmatprep.subr.bf16.mxu0 0
        %812 = vmatpush1.bf16.msra.mxu0 %v712
        %813 = vmatprep.subr.bf16.mxu0 0
        %814 = vmatpush1.bf16.msra.mxu0 %v711
        %815 = vmatprep.subr.bf16.mxu0 0
        %816 = vmatpush1.bf16.msra.mxu0 %v710
        %817 = vmatprep.subr.bf16.mxu0 0
        %818 = vmatpush1.bf16.msra.mxu0 %v709
        %819 = vmatprep.subr.bf16.mxu0 0
        %820 = vmatpush1.bf16.msra.mxu0 %v708
        %821 = vmatprep.subr.bf16.mxu0 0
        %822 = vmatpush1.bf16.msra.mxu0 %v707
        %823 = vmatprep.subr.bf16.mxu0 0
        %824 = vmatpush2.bf16.msra.mxu0 0
        %825 = vmatprep.subr.bf16.mxu0 0
        %826 = vmatpush2.bf16.msra.mxu0 0
        %827 = vmatprep.subr.bf16.mxu0 0
        %828 = vmatpush2.bf16.msra.mxu0 0
        %829 = vmatprep.subr.bf16.mxu0 0
        %830 = vmatpush2.bf16.msra.mxu0 0
        %831 = vmatprep.subr.bf16.mxu0 0
        %832 = vmatpush2.bf16.msra.mxu0 0
        %833 = vmatprep.subr.bf16.mxu0 0
        %834 = vmatpush2.bf16.msra.mxu0 0
        %835 = vmatprep.subr.bf16.mxu0 0
        %836 = vmatpush2.bf16.msra.mxu0 0
        %837 = vmatprep.subr.bf16.mxu0 0
        %838 = vmatpush2.bf16.msra.mxu0 0
        %839 = vmatprep.mubr.bf16.mxu0 0
        %840 = vmatmul.mubr.bf16.gmra.mxu0 %v547
        %v841 = vpop.f32.mrf.mxu0
        %v842 = vadd.f32 %v801, %v841
        %v843 = vpop.f32.mrf.mxu0
        %v844 = vpop.f32.mrf.mxu0
        %v845 = vadd.f32 %v804, %v844
        %v846 = vpop.f32.mrf.mxu0
        %847 = vdwg.mxu0
        %s848 = scalar_lea.vmem %s320, 16 [#allocation8]
        %849 = vst.msk [vmem:[%s848] sm:$0xff] %vm369, %v842
        %850 = vst.msk [vmem:[%s848 + $0x8] sm:$0xff] %vm369, %v845
        %s851 = sand.u32 %s190, 1
        %s852 = scalar_lea.sflag [#allocation5], %s851
        %s853 = sand.u32 %s190, 1
        %s854 = smul.addr %s853, 32
        %s855 = scalar_lea.vmem [#allocation8], %s854
        // Predicated region
        $region57: #{tpu_custom_call.1} parent=43 // pred_check
          %p856 = pneg %p200
        $region58: #{tpu_custom_call.1} parent=43 // pred_check_branch
          %858 = sbr.rel (%p856) target = $region60
        $region59: #{tpu_custom_call.1} parent=43 // pred_region
          %s859 = smul.u32 2, %s26
          %s860 = smul.u32 2, %s27
          %s862 = ssub.s32 512, 512
          %863 = vsyncadd %s852, %s862
          %s864 = smul.addr %s859, 2
          %s865 = sadd.s32 %s860, %s864
          %s866 = smul.addr %s865, 128
          %s867 = scalar_lea.hbm %s6, %s866
          %s868 = sshll.u32 %s855, 4
          %s869 = int_to_ptr.vmem [resolvable:$true] %s868
          %874 = dma.vmem_to_hbm [thread:$0]  %s869, 512, %s867, %s852, 128, 128, 8
        $region60: #{tpu_custom_call.1} parent=43 // pred_fallthru
          _
      $region44: #{tpu_custom_call.1} parent=5 // pred_fallthru
        _
      %p875 = scmp.le.s32.totalorder 2, %s17
      // Predicated region
      $region61: #{tpu_custom_call.1} parent=5 // pred_check
        %p876 = pneg %p875
      $region62: #{tpu_custom_call.1} parent=5 // pred_check_branch
        %878 = sbr.rel (%p876) target = $region64
      $region63: #{tpu_custom_call.1} parent=5 // pred_region
        %s879 = ssub.s32 %s17, 2
        // Predicated region
        $region65: #{tpu_custom_call.1} parent=63 // pred_check
          %p880 = pneg %p206
        $region66: #{tpu_custom_call.1} parent=63 // pred_check_branch
          %882 = sbr.rel (%p880) target = $region68
        $region67: #{tpu_custom_call.1} parent=63 // pred_region
          %s883 = sand.u32 %s191, 1
          %s884 = scalar_lea.sflag [#allocation5], %s883
          %s885 = sand.u32 %s191, 1
          %s886 = smul.addr %s885, 32
          %s887 = scalar_lea.vmem [#allocation8], %s886
          %888 = dma.done %s884, 512
        $region68: #{tpu_custom_call.1} parent=63 // pred_fallthru
          _
      $region64: #{tpu_custom_call.1} parent=5 // pred_fallthru
        _
    $region6: #{tpu_custom_call.1} parent=1 // loop_footer
      %s21 = sadd.s32 1, %s17
    $region7: #{tpu_custom_call.1} parent=1 // loop_footer_branch
      %16 = sbr.rel target = $region3
    $region8: #{tpu_custom_call.1} parent=1 // loop_exit
      _
    %889 = vsyncpa [#allocation4], 1
    %s890 = scalar_lea.sflag [#allocation4], 1
    %891 = vsyncpa %s890, 1
    %892 = vsyncpa [#allocation7], 1
    %893 = vsyncpa [#allocation5], 1
    %s894 = scalar_lea.sflag [#allocation5], 1
    %895 = vsyncpa %s894, 1

</llo_original>
